<compile_context>
chip_gen: v6e
topology: v6e:2x2x1
jax: 0.10.0
libtpu: 0.0.40
codegen_flags: <defaults>
</compile_context>

<pallas_src>
import math

import jax
import jax.numpy as jnp
from jax.experimental import pallas as pl
from jax.experimental.pallas import tpu as pltpu

GRAVITY = 9.81          # PINNConfig.gravity
WATER_DENSITY = 1025.0  # PINNConfig.water_density
TWO_PI = 2.0 * math.pi
FOUR_PI = 4.0 * math.pi
_BIG = 3.0e38           # "no clip" bound for the direction lane


def _round_up(a, m):
    return ((a + m - 1) // m) * m


def _bf16_tanh_supported():
    """bf16 EUP exists on v6e/v7x; keep f32 tanh on older chips / if unsure."""
    try:
        kind = jax.devices()[0].device_kind.lower()
    except Exception:
        return False
    return ("v6" in kind) or ("v7" in kind)


def _choose_tiling(R: int):
    """Row tile (tm) and sub-chunk size. tm <= 1024; >= 2 grid steps whenever
    R is big enough (keeps both v7x TensorCores busy via the parallel axis)."""
    if R >= 512:
        tm = min(1024, _round_up((R + 1) // 2, 128))
    elif R >= 256:
        tm = 128
    else:
        tm = max(16, _round_up(R, 16))   # 16: bf16 sublane-pack friendly
    if tm % 256 == 0:
        sub = 256
    elif tm % 128 == 0:
        sub = 128
    else:
        sub = tm
    return tm, sub


def _make_kernel(sub_rows: int, n_sub: int, tanh_dtype):
    """One row tile, processed in `n_sub` independent sub-chunks of `sub_rows`
    rows (statically unrolled so EUP tanh of one chunk can overlap MXU matmuls
    of another)."""

    def kernel(x_ref,
               w0, w1, b1, w2, b2, w3, b3, w4, b4,
               wa, ba, wb, bb, consts,
               enc_out, sc_out):
        # Load weights / biases / per-lane constant rows once per grid step.
        w0v = w0[...]
        hidden = ((w1[...], b1[...]), (w2[...], b2[...]),
                  (w3[...], b3[...]), (w4[...], b4[...]))
        wav, bav, wbv, bbv = wa[...], ba[...], wb[...], bb[...]
        clip_lo = consts[0:1, :]
        clip_hi = consts[1:2, :]
        c_inv2 = consts[2:3, :]   # coeff of 1/(v+eps)^2  (wavenumber lane)
        c_lin = consts[3:4, :]    # coeff of v            (identity + group-vel lanes)
        c_sq = consts[4:5, :]     # coeff of v^2          (energy lane)

        for c in range(n_sub):
            rows = slice(c * sub_rows, (c + 1) * sub_rows)

            # ---- encoder: Linear -> (Tanh -> Linear) x 4 (bf16 MXU, f32 acc)
            # Layer-0 bias is folded into w0 via the ones-lane of x.
            h = jnp.dot(x_ref[rows, :], w0v, preferred_element_type=jnp.float32)
            for w, b in hidden:
                a = jnp.tanh(h.astype(tanh_dtype)).astype(jnp.bfloat16)
                h = jnp.dot(a, w, preferred_element_type=jnp.float32) + b
            enc_out[rows, :] = h

            # ---- fused prediction heads: one [H, 3*half] matmul + one
            # block-diagonal [3*half, 8] matmul.  Output lanes:
            #   0 height, 1 direction, 2 period, 3 period(dup), 4 period(dup),
            #   5 height(dup), 6/7 zero padding (never read).
            t = jnp.dot(h.astype(jnp.bfloat16), wav,
                        preferred_element_type=jnp.float32) + bav
            z = jnp.tanh(t.astype(tanh_dtype)).astype(jnp.bfloat16)
            raw = jnp.dot(z, wbv, preferred_element_type=jnp.float32) + bbv

            # Per-lane clip (height / period bounds; direction unbounded).
            v = jnp.clip(raw, clip_lo, clip_hi)
            # torch.fmod(x, 360) == x - 360*trunc(x/360); a no-op on every lane
            # except direction (|v| < 360 everywhere else after the clip).
            v = v - 360.0 * jnp.trunc(v * (1.0 / 360.0))
            v = jnp.where(v < 0.0, v + 360.0, v)

            # Physics as pure per-lane elementwise work on the [sub, 8] tile:
            #   lane 3: (2*pi)^2/g / (T+eps)^2   lane 4: g/(4*pi) * T
            #   lane 5: rho*g/8 * H^2            lanes 0..2: identity
            inv = 1.0 / (v + 1e-6)
            sc_out[rows, :] = c_inv2 * (inv * inv) + c_lin * v + c_sq * (v * v)

    return kernel


def pinn_forward(x, coords, params):
    """JAX/Pallas equivalent of PhysicsInformedWaveNet.forward."""
    B, N, F = x.shape
    R = B * N
    H = params["w0"].shape[1]
    half = H // 2
    tanh_dtype = jnp.bfloat16 if _bf16_tanh_supported() else jnp.float32

    # -------------------- weight packing (done once per call) -------------
    F_pad = max(16, _round_up(F + 1, 8))            # +1 ones-lane (bias fold)
    w0 = jnp.zeros((F_pad, H), jnp.float32)
    w0 = w0.at[:F, :].set(params["w0"])
    w0 = w0.at[F, :].set(params["b0"][0])            # layer-0 bias folded in
    w0 = w0.astype(jnp.bfloat16)

    enc_args = [w0]
    for i in range(1, 5):
        enc_args.append(params[f"w{i}"].astype(jnp.bfloat16))
        enc_args.append(params[f"b{i}"].astype(jnp.float32))

    # fused head layer 1: [H, 3*half]
    wa = jnp.concatenate([params["wh1"], params["wd1"], params["wp1"]],
                         axis=1).astype(jnp.bfloat16)
    ba = jnp.concatenate([params["bh1"], params["bd1"], params["bp1"]],
                         axis=1).astype(jnp.float32)

    # block-diagonal head layer 2: [3*half, 8], period/height duplicated so
    # the physics terms become per-lane elementwise work in the kernel.
    wb = jnp.zeros((3 * half, 8), jnp.float32)
    wb = wb.at[0:half, 0].set(params["wh2"][:, 0])
    wb = wb.at[half:2 * half, 1].set(params["wd2"][:, 0])
    wb = wb.at[2 * half:, 2].set(params["wp2"][:, 0])
    wb = wb.at[2 * half:, 3].set(params["wp2"][:, 0])   # period dup -> wavenumber
    wb = wb.at[2 * half:, 4].set(params["wp2"][:, 0])   # period dup -> group vel
    wb = wb.at[0:half, 5].set(params["wh2"][:, 0])       # height dup -> energy
    wb = wb.astype(jnp.bfloat16)

    bb = jnp.zeros((1, 8), jnp.float32)
    bb = bb.at[0, 0].set(params["bh2"][0, 0])
    bb = bb.at[0, 1].set(params["bd2"][0, 0])
    bb = bb.at[0, 2].set(params["bp2"][0, 0])
    bb = bb.at[0, 3].set(params["bp2"][0, 0])
    bb = bb.at[0, 4].set(params["bp2"][0, 0])
    bb = bb.at[0, 5].set(params["bh2"][0, 0])

    # per-lane constants: rows = clip_lo, clip_hi, inv^2-coeff, v-coeff, v^2-coeff
    clip_lo = [0.01, -_BIG, 1.0, 1.0, 1.0, 0.01, 0.0, 0.0]
    clip_hi = [20.0, _BIG, 25.0, 25.0, 25.0, 20.0, 0.0, 0.0]
    c_inv2 = [0.0, 0.0, 0.0, TWO_PI * TWO_PI / GRAVITY, 0.0, 0.0, 0.0, 0.0]
    c_lin = [1.0, 1.0, 1.0, 0.0, GRAVITY / FOUR_PI, 0.0, 0.0, 0.0]
    c_sq = [0.0, 0.0, 0.0, 0.0, 0.0, 0.125 * WATER_DENSITY * GRAVITY, 0.0, 0.0]
    zeros8 = [0.0] * 8
    consts = jnp.array([clip_lo, clip_hi, c_inv2, c_lin, c_sq,
                        zeros8, zeros8, zeros8], jnp.float32)      # (8, 8)

    weight_args = enc_args + [wa, ba, wb, bb, consts]

    # -------------------------- row tiling / padding ----------------------
    tm, sub = _choose_tiling(R)
    n_sub = tm // sub
    R_pad = _round_up(R, tm)

    x_flat = x.reshape(R, F)
    x_pad = jnp.zeros((R_pad, F_pad), jnp.bfloat16)
    x_pad = x_pad.at[:R, :F].set(x_flat.astype(jnp.bfloat16))
    x_pad = x_pad.at[:R, F].set(1.0)                  # ones-lane for bias fold

    grid = (R_pad // tm,)

    def row_spec(d):
        return pl.BlockSpec((tm, d), lambda i: (i, 0))

    def full_spec(shape):
        return pl.BlockSpec(shape, lambda i: (0,) * len(shape))

    in_specs = [row_spec(F_pad)] + [full_spec(a.shape) for a in weight_args]
    out_specs = [row_spec(H), row_spec(8)]
    out_shape = (jax.ShapeDtypeStruct((R_pad, H), jnp.float32),
                 jax.ShapeDtypeStruct((R_pad, 8), jnp.float32))

    enc, sc = pl.pallas_call(
        _make_kernel(sub, n_sub, tanh_dtype),
        out_shape=out_shape,
        grid_spec=pltpu.PrefetchScalarGridSpec(
            num_scalar_prefetch=0,
            grid=grid,
            in_specs=in_specs,
            out_specs=out_specs,
        ),
        compiler_params=pltpu.CompilerParams(
            dimension_semantics=("parallel",)),
    )(x_pad, *weight_args)

    enc = enc[:R]
    sc = sc[:R]

    wave_height = sc[:, 0:1].reshape(B, N, 1)
    wave_direction = sc[:, 1:2].reshape(B, N, 1)
    wave_period = sc[:, 2:3].reshape(B, N, 1)
    predictions = jnp.concatenate([wave_height, wave_direction, wave_period],
                                  axis=-1)

    result = {
        "predictions": predictions,
        "wave_height": wave_height,
        "wave_direction": wave_direction,
        "wave_period": wave_period,
        "encoded_features": enc.reshape(B, N, H),
    }
    if coords is not None:
        result.update({
            "wavenumber": sc[:, 3:4].reshape(B, N, 1),
            "group_velocity": sc[:, 4:5].reshape(B, N, 1),
            "wave_energy": sc[:, 5:6].reshape(B, N, 1),
            "coordinates": coords,
        })
    return result


def init_params(key, input_features=11, hidden_dim=128):
    """Deterministic Xavier-uniform weights, zero biases (as in _initialize_weights)."""
    half = hidden_dim // 2
    keys = iter(jax.random.split(key, 16))

    def xavier(shape):
        fan_in, fan_out = shape
        limit = math.sqrt(6.0 / (fan_in + fan_out))
        return jax.random.uniform(next(keys), shape, jnp.float32, -limit, limit)

    p = {}
    p["w0"] = xavier((input_features, hidden_dim))
    p["b0"] = jnp.zeros((1, hidden_dim), jnp.float32)
    for i in range(1, 5):
        p[f"w{i}"] = xavier((hidden_dim, hidden_dim))
        p[f"b{i}"] = jnp.zeros((1, hidden_dim), jnp.float32)
    for name in ("h", "d", "p"):
        p[f"w{name}1"] = xavier((hidden_dim, half))
        p[f"b{name}1"] = jnp.zeros((1, half), jnp.float32)
        p[f"w{name}2"] = xavier((half, 1))
        p[f"b{name}2"] = jnp.zeros((1, 1), jnp.float32)
    return p
    # TODO(synk): coord_embed exists in the PyTorch module but is never used in forward.


def _reference_forward(x, coords, params):
    """Pure-JAX f32 reference mirroring the PyTorch forward (sanity check)."""
    B, N, F = x.shape
    xf = x.reshape(-1, F)
    h = xf @ params["w0"] + params["b0"]
    for i in range(1, 5):
        h = jnp.tanh(h) @ params[f"w{i}"] + params[f"b{i}"]

    def head(n):
        z = jnp.tanh(h @ params[f"w{n}1"] + params[f"b{n}1"])
        return z @ params[f"w{n}2"] + params[f"b{n}2"]

    wh = jnp.clip(head("h"), 0.01, 20.0)
    wd = jnp.fmod(head("d"), 360.0)
    wd = jnp.where(wd < 0, wd + 360.0, wd)
    wp = jnp.clip(head("p"), 1.0, 25.0)
    omega = TWO_PI / (wp + 1e-6)
    return {
        "encoded_features": h.reshape(B, N, -1),
        "wave_height": wh.reshape(B, N, 1),
        "wave_direction": wd.reshape(B, N, 1),
        "wave_period": wp.reshape(B, N, 1),
        "wavenumber": (omega ** 2 / GRAVITY).reshape(B, N, 1),
        "group_velocity": (GRAVITY * wp / FOUR_PI).reshape(B, N, 1),
        "wave_energy": (0.125 * WATER_DENSITY * GRAVITY * wh ** 2).reshape(B, N, 1),
    }


if __name__ == "__main__":
    key = jax.random.PRNGKey(0)
    kx, kc, kp = jax.random.split(key, 3)

    B, N, F = 2, 16, 11          # batch, num_nodes, input_features (module default F=11)
    HIDDEN = 128                  # hidden_dim (lane-friendly small config)

    x = jax.random.normal(kx, (B, N, F), dtype=jnp.float32)
    coords = jax.random.normal(kc, (B, N, 2), dtype=jnp.float32)
    params = init_params(kp, input_features=F, hidden_dim=HIDDEN)

    out = pinn_forward(x, coords, params)
    out = jax.tree_util.tree_map(jax.block_until_ready, out)

    ref = _reference_forward(x, coords, params)

    # heads / encoder vs f32 reference (bf16 MXU operands -> loose tolerances)
    for k in ("wave_height", "wave_period", "encoded_features"):
        assert jnp.allclose(out[k], ref[k], rtol=5e-2, atol=5e-2), f"mismatch in {k}"
    # direction compared circularly (bf16 error can cross the 0/360 wrap)
    dd = jnp.abs(out["wave_direction"] - ref["wave_direction"])
    dd = jnp.minimum(dd, 360.0 - dd)
    assert jnp.max(dd) < 1.0, "mismatch in wave_direction"

    # physics terms must be consistent with the kernel's own height/period
    wh_k, wp_k = out["wave_height"], out["wave_period"]
    omega = TWO_PI / (wp_k + 1e-6)
    assert jnp.allclose(out["wavenumber"], omega * omega / GRAVITY,
                        rtol=1e-4, atol=1e-6), "mismatch in wavenumber"
    assert jnp.allclose(out["group_velocity"], GRAVITY * wp_k / FOUR_PI,
                        rtol=1e-4, atol=1e-6), "mismatch in group_velocity"
    assert jnp.allclose(out["wave_energy"],
                        0.125 * WATER_DENSITY * GRAVITY * wh_k * wh_k,
                        rtol=1e-4, atol=1e-3), "mismatch in wave_energy"

    assert out["predictions"].shape == (B, N, 3)
    assert jnp.allclose(
        out["predictions"],
        jnp.concatenate([out["wave_height"], out["wave_direction"],
                         out["wave_period"]], axis=-1))
    assert out["coordinates"].shape == (B, N, 2)

    print("KERNEL_OK")
</pallas_src>

<mosaic_0001>
module attributes {stable_mosaic.version = 11 : i64} {
  func.func @kernel(%arg0: i32, %arg1: memref<32x16xbf16, #tpu.memory_space<vmem>>, %arg2: memref<16x128xbf16, #tpu.memory_space<vmem>>, %arg3: memref<128x128xbf16, #tpu.memory_space<vmem>>, %arg4: memref<1x128xf32, #tpu.memory_space<vmem>>, %arg5: memref<128x128xbf16, #tpu.memory_space<vmem>>, %arg6: memref<1x128xf32, #tpu.memory_space<vmem>>, %arg7: memref<128x128xbf16, #tpu.memory_space<vmem>>, %arg8: memref<1x128xf32, #tpu.memory_space<vmem>>, %arg9: memref<128x128xbf16, #tpu.memory_space<vmem>>, %arg10: memref<1x128xf32, #tpu.memory_space<vmem>>, %arg11: memref<128x192xbf16, #tpu.memory_space<vmem>>, %arg12: memref<1x192xf32, #tpu.memory_space<vmem>>, %arg13: memref<192x8xbf16, #tpu.memory_space<vmem>>, %arg14: memref<1x8xf32, #tpu.memory_space<vmem>>, %arg15: memref<8x8xf32, #tpu.memory_space<vmem>>, %arg16: memref<32x128xf32, #tpu.memory_space<vmem>>, %arg17: memref<32x8xf32, #tpu.memory_space<vmem>>) attributes {dimension_semantics = [#tpu.dimension_semantics<parallel>], iteration_bounds = array<i64: 1>, scalar_prefetch = 0 : i64, scratch_operands = 0 : i64, tpu.core_type = #tpu.core_type<tc>, window_params = [{transform_indices = @transform_0, window_bounds = array<i64: 32, 16>}, {pipeline_mode = #tpu.pipeline_mode<synchronous>, transform_indices = @transform_1, window_bounds = array<i64: 16, 128>}, {pipeline_mode = #tpu.pipeline_mode<synchronous>, transform_indices = @transform_2, window_bounds = array<i64: 128, 128>}, {pipeline_mode = #tpu.pipeline_mode<synchronous>, transform_indices = @transform_3, window_bounds = array<i64: 1, 128>}, {pipeline_mode = #tpu.pipeline_mode<synchronous>, transform_indices = @transform_4, window_bounds = array<i64: 128, 128>}, {pipeline_mode = #tpu.pipeline_mode<synchronous>, transform_indices = @transform_5, window_bounds = array<i64: 1, 128>}, {pipeline_mode = #tpu.pipeline_mode<synchronous>, transform_indices = @transform_6, window_bounds = array<i64: 128, 128>}, {pipeline_mode = #tpu.pipeline_mode<synchronous>, transform_indices = @transform_7, window_bounds = array<i64: 1, 128>}, {pipeline_mode = #tpu.pipeline_mode<synchronous>, transform_indices = @transform_8, window_bounds = array<i64: 128, 128>}, {pipeline_mode = #tpu.pipeline_mode<synchronous>, transform_indices = @transform_9, window_bounds = array<i64: 1, 128>}, {pipeline_mode = #tpu.pipeline_mode<synchronous>, transform_indices = @transform_10, window_bounds = array<i64: 128, 192>}, {pipeline_mode = #tpu.pipeline_mode<synchronous>, transform_indices = @transform_11, window_bounds = array<i64: 1, 192>}, {pipeline_mode = #tpu.pipeline_mode<synchronous>, transform_indices = @transform_12, window_bounds = array<i64: 192, 8>}, {pipeline_mode = #tpu.pipeline_mode<synchronous>, transform_indices = @transform_13, window_bounds = array<i64: 1, 8>}, {pipeline_mode = #tpu.pipeline_mode<synchronous>, transform_indices = @transform_14, window_bounds = array<i64: 8, 8>}, {transform_indices = @transform_15, window_bounds = array<i64: 32, 128>}, {transform_indices = @transform_16, window_bounds = array<i64: 32, 8>}]} {
    %c0 = arith.constant 0 : index
    %c0_0 = arith.constant 0 : index
    %0 = vector.load %arg2[%c0, %c0_0] : memref<16x128xbf16, #tpu.memory_space<vmem>>, vector<16x128xbf16>
    %c0_1 = arith.constant 0 : index
    %c0_2 = arith.constant 0 : index
    %1 = vector.load %arg3[%c0_1, %c0_2] : memref<128x128xbf16, #tpu.memory_space<vmem>>, vector<128x128xbf16>
    %c0_3 = arith.constant 0 : index
    %c0_4 = arith.constant 0 : index
    %2 = vector.load %arg4[%c0_3, %c0_4] : memref<1x128xf32, #tpu.memory_space<vmem>>, vector<1x128xf32>
    %c0_5 = arith.constant 0 : index
    %c0_6 = arith.constant 0 : index
    %3 = vector.load %arg5[%c0_5, %c0_6] : memref<128x128xbf16, #tpu.memory_space<vmem>>, vector<128x128xbf16>
    %c0_7 = arith.constant 0 : index
    %c0_8 = arith.constant 0 : index
    %4 = vector.load %arg6[%c0_7, %c0_8] : memref<1x128xf32, #tpu.memory_space<vmem>>, vector<1x128xf32>
    %c0_9 = arith.constant 0 : index
    %c0_10 = arith.constant 0 : index
    %5 = vector.load %arg7[%c0_9, %c0_10] : memref<128x128xbf16, #tpu.memory_space<vmem>>, vector<128x128xbf16>
    %c0_11 = arith.constant 0 : index
    %c0_12 = arith.constant 0 : index
    %6 = vector.load %arg8[%c0_11, %c0_12] : memref<1x128xf32, #tpu.memory_space<vmem>>, vector<1x128xf32>
    %c0_13 = arith.constant 0 : index
    %c0_14 = arith.constant 0 : index
    %7 = vector.load %arg9[%c0_13, %c0_14] : memref<128x128xbf16, #tpu.memory_space<vmem>>, vector<128x128xbf16>
    %c0_15 = arith.constant 0 : index
    %c0_16 = arith.constant 0 : index
    %8 = vector.load %arg10[%c0_15, %c0_16] : memref<1x128xf32, #tpu.memory_space<vmem>>, vector<1x128xf32>
    %c0_17 = arith.constant 0 : index
    %c0_18 = arith.constant 0 : index
    %9 = vector.load %arg11[%c0_17, %c0_18] : memref<128x192xbf16, #tpu.memory_space<vmem>>, vector<128x192xbf16>
    %c0_19 = arith.constant 0 : index
    %c0_20 = arith.constant 0 : index
    %10 = vector.load %arg12[%c0_19, %c0_20] : memref<1x192xf32, #tpu.memory_space<vmem>>, vector<1x192xf32>
    %c0_21 = arith.constant 0 : index
    %c0_22 = arith.constant 0 : index
    %11 = vector.load %arg13[%c0_21, %c0_22] : memref<192x8xbf16, #tpu.memory_space<vmem>>, vector<192x8xbf16>
    %c0_23 = arith.constant 0 : index
    %c0_24 = arith.constant 0 : index
    %12 = vector.load %arg14[%c0_23, %c0_24] : memref<1x8xf32, #tpu.memory_space<vmem>>, vector<1x8xf32>
    %c0_25 = arith.constant 0 : index
    %c0_26 = arith.constant 0 : index
    %13 = vector.load %arg15[%c0_25, %c0_26] : memref<8x8xf32, #tpu.memory_space<vmem>>, vector<1x8xf32>
    %c1 = arith.constant 1 : index
    %c0_27 = arith.constant 0 : index
    %14 = vector.load %arg15[%c1, %c0_27] : memref<8x8xf32, #tpu.memory_space<vmem>>, vector<1x8xf32>
    %c2 = arith.constant 2 : index
    %c0_28 = arith.constant 0 : index
    %15 = vector.load %arg15[%c2, %c0_28] : memref<8x8xf32, #tpu.memory_space<vmem>>, vector<1x8xf32>
    %c3 = arith.constant 3 : index
    %c0_29 = arith.constant 0 : index
    %16 = vector.load %arg15[%c3, %c0_29] : memref<8x8xf32, #tpu.memory_space<vmem>>, vector<1x8xf32>
    %c4 = arith.constant 4 : index
    %c0_30 = arith.constant 0 : index
    %17 = vector.load %arg15[%c4, %c0_30] : memref<8x8xf32, #tpu.memory_space<vmem>>, vector<1x8xf32>
    %c0_31 = arith.constant 0 : index
    %c0_32 = arith.constant 0 : index
    %18 = vector.load %arg1[%c0_31, %c0_32] : memref<32x16xbf16, #tpu.memory_space<vmem>>, vector<32x16xbf16>
    %cst = arith.constant dense<0.000000e+00> : vector<32x128xf32>
    %19 = tpu.matmul %18, %0, %cst {dimension_numbers = #tpu.dot_dimension_numbers<[1], [0], [0], [1], [0, 0, 1, 1], [], []>} : vector<32x16xbf16>, vector<16x128xbf16>, vector<32x128xf32> -> vector<32x128xf32>
    %20 = math.tanh %19 : vector<32x128xf32>
    %21 = arith.truncf %20 : vector<32x128xf32> to vector<32x128xbf16>
    %cst_33 = arith.constant dense<0.000000e+00> : vector<32x128xf32>
    %22 = tpu.matmul %21, %1, %cst_33 {dimension_numbers = #tpu.dot_dimension_numbers<[1], [0], [0], [1], [0, 0, 1, 1], [], []>} : vector<32x128xbf16>, vector<128x128xbf16>, vector<32x128xf32> -> vector<32x128xf32>
    %23 = vector.broadcast %2 : vector<1x128xf32> to vector<32x128xf32>
    %24 = arith.addf %22, %23 : vector<32x128xf32>
    %25 = math.tanh %24 : vector<32x128xf32>
    %26 = arith.truncf %25 : vector<32x128xf32> to vector<32x128xbf16>
    %cst_34 = arith.constant dense<0.000000e+00> : vector<32x128xf32>
    %27 = tpu.matmul %26, %3, %cst_34 {dimension_numbers = #tpu.dot_dimension_numbers<[1], [0], [0], [1], [0, 0, 1, 1], [], []>} : vector<32x128xbf16>, vector<128x128xbf16>, vector<32x128xf32> -> vector<32x128xf32>
    %28 = vector.broadcast %4 : vector<1x128xf32> to vector<32x128xf32>
    %29 = arith.addf %27, %28 : vector<32x128xf32>
    %30 = math.tanh %29 : vector<32x128xf32>
    %31 = arith.truncf %30 : vector<32x128xf32> to vector<32x128xbf16>
    %cst_35 = arith.constant dense<0.000000e+00> : vector<32x128xf32>
    %32 = tpu.matmul %31, %5, %cst_35 {dimension_numbers = #tpu.dot_dimension_numbers<[1], [0], [0], [1], [0, 0, 1, 1], [], []>} : vector<32x128xbf16>, vector<128x128xbf16>, vector<32x128xf32> -> vector<32x128xf32>
    %33 = vector.broadcast %6 : vector<1x128xf32> to vector<32x128xf32>
    %34 = arith.addf %32, %33 : vector<32x128xf32>
    %35 = math.tanh %34 : vector<32x128xf32>
    %36 = arith.truncf %35 : vector<32x128xf32> to vector<32x128xbf16>
    %cst_36 = arith.constant dense<0.000000e+00> : vector<32x128xf32>
    %37 = tpu.matmul %36, %7, %cst_36 {dimension_numbers = #tpu.dot_dimension_numbers<[1], [0], [0], [1], [0, 0, 1, 1], [], []>} : vector<32x128xbf16>, vector<128x128xbf16>, vector<32x128xf32> -> vector<32x128xf32>
    %38 = vector.broadcast %8 : vector<1x128xf32> to vector<32x128xf32>
    %39 = arith.addf %37, %38 : vector<32x128xf32>
    %c0_37 = arith.constant 0 : index
    %c0_38 = arith.constant 0 : index
    %40 = vector.load %arg16[%c0_37, %c0_38] : memref<32x128xf32, #tpu.memory_space<vmem>>, vector<32x128xf32>
    tpu.vector_store %arg16[%c0_37, %c0_38], %39 {strides = array<i32>} : memref<32x128xf32, #tpu.memory_space<vmem>>, vector<32x128xf32>,
    %41 = arith.truncf %39 : vector<32x128xf32> to vector<32x128xbf16>
    %cst_39 = arith.constant dense<0.000000e+00> : vector<32x192xf32>
    %42 = tpu.matmul %41, %9, %cst_39 {dimension_numbers = #tpu.dot_dimension_numbers<[1], [0], [0], [1], [0, 0, 1, 1], [], []>} : vector<32x128xbf16>, vector<128x192xbf16>, vector<32x192xf32> -> vector<32x192xf32>
    %43 = vector.broadcast %10 : vector<1x192xf32> to vector<32x192xf32>
    %44 = arith.addf %42, %43 : vector<32x192xf32>
    %45 = math.tanh %44 : vector<32x192xf32>
    %46 = arith.truncf %45 : vector<32x192xf32> to vector<32x192xbf16>
    %cst_40 = arith.constant dense<0.000000e+00> : vector<32x8xf32>
    %47 = tpu.matmul %46, %11, %cst_40 {dimension_numbers = #tpu.dot_dimension_numbers<[1], [0], [0], [1], [0, 0, 1, 1], [], []>} : vector<32x192xbf16>, vector<192x8xbf16>, vector<32x8xf32> -> vector<32x8xf32>
    %48 = vector.broadcast %12 : vector<1x8xf32> to vector<32x8xf32>
    %49 = arith.addf %47, %48 : vector<32x8xf32>
    %50 = vector.broadcast %13 : vector<1x8xf32> to vector<32x8xf32>
    %51 = arith.maximumf %50, %49 : vector<32x8xf32>
    %52 = vector.broadcast %14 : vector<1x8xf32> to vector<32x8xf32>
    %53 = arith.minimumf %52, %51 : vector<32x8xf32>
    %cst_41 = arith.constant 0.00277777785 : f32
    %54 = vector.broadcast %cst_41 : f32 to vector<32x8xf32>
    %55 = arith.mulf %53, %54 : vector<32x8xf32>
    %cst_42 = arith.constant 0.000000e+00 : f32
    %56 = vector.broadcast %cst_42 : f32 to vector<32x8xf32>
    %57 = arith.cmpf olt, %55, %56 : vector<32x8xf32>
    %58 = math.ceil %55 : vector<32x8xf32>
    %59 = math.floor %55 : vector<32x8xf32>
    %60 = arith.select %57, %58, %59 : vector<32x8xi1>, vector<32x8xf32>
    %cst_43 = arith.constant 3.600000e+02 : f32
    %61 = vector.broadcast %cst_43 : f32 to vector<32x8xf32>
    %62 = arith.mulf %61, %60 : vector<32x8xf32>
    %63 = arith.subf %53, %62 : vector<32x8xf32>
    %cst_44 = arith.constant 0.000000e+00 : f32
    %64 = vector.broadcast %cst_44 : f32 to vector<32x8xf32>
    %65 = arith.cmpf olt, %63, %64 : vector<32x8xf32>
    %cst_45 = arith.constant 3.600000e+02 : f32
    %66 = vector.broadcast %cst_45 : f32 to vector<32x8xf32>
    %67 = arith.addf %63, %66 : vector<32x8xf32>
    %68 = arith.select %65, %67, %63 : vector<32x8xi1>, vector<32x8xf32>
    %cst_46 = arith.constant 9.99999997E-7 : f32
    %69 = vector.broadcast %cst_46 : f32 to vector<32x8xf32>
    %70 = arith.addf %68, %69 : vector<32x8xf32>
    %cst_47 = arith.constant 1.000000e+00 : f32
    %71 = vector.broadcast %cst_47 : f32 to vector<32x8xf32>
    %72 = arith.divf %71, %70 : vector<32x8xf32>
    %73 = arith.mulf %72, %72 : vector<32x8xf32>
    %74 = vector.broadcast %15 : vector<1x8xf32> to vector<32x8xf32>
    %75 = arith.mulf %74, %73 : vector<32x8xf32>
    %76 = vector.broadcast %16 : vector<1x8xf32> to vector<32x8xf32>
    %77 = arith.mulf %76, %68 : vector<32x8xf32>
    %78 = arith.addf %75, %77 : vector<32x8xf32>
    %79 = arith.mulf %68, %68 : vector<32x8xf32>
    %80 = vector.broadcast %17 : vector<1x8xf32> to vector<32x8xf32>
    %81 = arith.mulf %80, %79 : vector<32x8xf32>
    %82 = arith.addf %78, %81 : vector<32x8xf32>
    %c0_48 = arith.constant 0 : index
    %c0_49 = arith.constant 0 : index
    %83 = vector.load %arg17[%c0_48, %c0_49] : memref<32x8xf32, #tpu.memory_space<vmem>>, vector<32x8xf32>
    tpu.vector_store %arg17[%c0_48, %c0_49], %82 {strides = array<i32>} : memref<32x8xf32, #tpu.memory_space<vmem>>, vector<32x8xf32>,
    return
  }
  func.func @transform_0(%arg0: i32) -> (i32, i32) {
    %c0_i32 = arith.constant 0 : i32
    %c0_i32_0 = arith.constant 0 : i32
    return %arg0, %c0_i32 : i32, i32
  }
  func.func @transform_1(%arg0: i32) -> (i32, i32) {
    %c0_i32 = arith.constant 0 : i32
    %c0_i32_0 = arith.constant 0 : i32
    %c0_i32_1 = arith.constant 0 : i32
    return %c0_i32, %c0_i32_0 : i32, i32
  }
  func.func @transform_2(%arg0: i32) -> (i32, i32) {
    %c0_i32 = arith.constant 0 : i32
    %c0_i32_0 = arith.constant 0 : i32
    %c0_i32_1 = arith.constant 0 : i32
    return %c0_i32, %c0_i32_0 : i32, i32
  }
  func.func @transform_3(%arg0: i32) -> (i32, i32) {
    %c0_i32 = arith.constant 0 : i32
    %c0_i32_0 = arith.constant 0 : i32
    %c0_i32_1 = arith.constant 0 : i32
    return %c0_i32, %c0_i32_0 : i32, i32
  }
  func.func @transform_4(%arg0: i32) -> (i32, i32) {
    %c0_i32 = arith.constant 0 : i32
    %c0_i32_0 = arith.constant 0 : i32
    %c0_i32_1 = arith.constant 0 : i32
    return %c0_i32, %c0_i32_0 : i32, i32
  }
  func.func @transform_5(%arg0: i32) -> (i32, i32) {
    %c0_i32 = arith.constant 0 : i32
    %c0_i32_0 = arith.constant 0 : i32
    %c0_i32_1 = arith.constant 0 : i32
    return %c0_i32, %c0_i32_0 : i32, i32
  }
  func.func @transform_6(%arg0: i32) -> (i32, i32) {
    %c0_i32 = arith.constant 0 : i32
    %c0_i32_0 = arith.constant 0 : i32
    %c0_i32_1 = arith.constant 0 : i32
    return %c0_i32, %c0_i32_0 : i32, i32
  }
  func.func @transform_7(%arg0: i32) -> (i32, i32) {
    %c0_i32 = arith.constant 0 : i32
    %c0_i32_0 = arith.constant 0 : i32
    %c0_i32_1 = arith.constant 0 : i32
    return %c0_i32, %c0_i32_0 : i32, i32
  }
  func.func @transform_8(%arg0: i32) -> (i32, i32) {
    %c0_i32 = arith.constant 0 : i32
    %c0_i32_0 = arith.constant 0 : i32
    %c0_i32_1 = arith.constant 0 : i32
    return %c0_i32, %c0_i32_0 : i32, i32
  }
  func.func @transform_9(%arg0: i32) -> (i32, i32) {
    %c0_i32 = arith.constant 0 : i32
    %c0_i32_0 = arith.constant 0 : i32
    %c0_i32_1 = arith.constant 0 : i32
    return %c0_i32, %c0_i32_0 : i32, i32
  }
  func.func @transform_10(%arg0: i32) -> (i32, i32) {
    %c0_i32 = arith.constant 0 : i32
    %c0_i32_0 = arith.constant 0 : i32
    %c0_i32_1 = arith.constant 0 : i32
    return %c0_i32, %c0_i32_0 : i32, i32
  }
  func.func @transform_11(%arg0: i32) -> (i32, i32) {
    %c0_i32 = arith.constant 0 : i32
    %c0_i32_0 = arith.constant 0 : i32
    %c0_i32_1 = arith.constant 0 : i32
    return %c0_i32, %c0_i32_0 : i32, i32
  }
  func.func @transform_12(%arg0: i32) -> (i32, i32) {
    %c0_i32 = arith.constant 0 : i32
    %c0_i32_0 = arith.constant 0 : i32
    %c0_i32_1 = arith.constant 0 : i32
    return %c0_i32, %c0_i32_0 : i32, i32
  }
  func.func @transform_13(%arg0: i32) -> (i32, i32) {
    %c0_i32 = arith.constant 0 : i32
    %c0_i32_0 = arith.constant 0 : i32
    %c0_i32_1 = arith.constant 0 : i32
    return %c0_i32, %c0_i32_0 : i32, i32
  }
  func.func @transform_14(%arg0: i32) -> (i32, i32) {
    %c0_i32 = arith.constant 0 : i32
    %c0_i32_0 = arith.constant 0 : i32
    %c0_i32_1 = arith.constant 0 : i32
    return %c0_i32, %c0_i32_0 : i32, i32
  }
  func.func @transform_15(%arg0: i32) -> (i32, i32) {
    %c0_i32 = arith.constant 0 : i32
    %c0_i32_0 = arith.constant 0 : i32
    return %arg0, %c0_i32 : i32, i32
  }
  func.func @transform_16(%arg0: i32) -> (i32, i32) {
    %c0_i32 = arith.constant 0 : i32
    %c0_i32_0 = arith.constant 0 : i32
    return %arg0, %c0_i32 : i32, i32
  }
}

</mosaic_0001>

<llo_original>
// kernel: tpu_custom_call.1
$region0: #{tpu_custom_call.1}
  #allocation0 [shape = 'u32[]', space=smem, size = 0x4, offset = 0x4, fixed_abs, tag = 'smem constant byte address 0x4 - core index']
  #allocation1 [shape = 'u32[144,128]{1,0:T(1,128)}', space=vmem, size = 0x12000, scoped, tag = 'internal scratch']
  %s0 = inlined_call_operand.vmem [shape: bf16[32,16], index: 0, kind: input, shape index: {}]
  %s1 = inlined_call_operand.vmem [shape: bf16[16,128], index: 1, kind: input, shape index: {}]
  %s2 = inlined_call_operand.vmem [shape: bf16[128,128], index: 2, kind: input, shape index: {}]
  %s3 = inlined_call_operand.vmem [shape: f32[1,128], index: 3, kind: input, shape index: {}]
  %s4 = inlined_call_operand.vmem [shape: bf16[128,128], index: 4, kind: input, shape index: {}]
  %s5 = inlined_call_operand.vmem [shape: f32[1,128], index: 5, kind: input, shape index: {}]
  %s6 = inlined_call_operand.vmem [shape: bf16[128,128], index: 6, kind: input, shape index: {}]
  %s7 = inlined_call_operand.hbm [shape: f32[1,128], index: 7, kind: input, shape index: {}]
  %s8 = inlined_call_operand.vmem [shape: bf16[128,128], index: 8, kind: input, shape index: {}]
  %s9 = inlined_call_operand.hbm [shape: f32[1,128], index: 9, kind: input, shape index: {}]
  %s10 = inlined_call_operand.vmem [shape: bf16[128,192], index: 10, kind: input, shape index: {}]
  %s11 = inlined_call_operand.vmem [shape: f32[1,192], index: 11, kind: input, shape index: {}]
  %s12 = inlined_call_operand.vmem [shape: bf16[192,8], index: 12, kind: input, shape index: {}]
  %s13 = inlined_call_operand.vmem [shape: f32[1,8], index: 13, kind: input, shape index: {}]
  %s14 = inlined_call_operand.hbm [shape: f32[8,8], index: 14, kind: input, shape index: {}]
  %s15 = inlined_call_operand.hbm [shape: f32[32,128], index: 15, kind: output, shape index: {0}]
  %s16 = inlined_call_operand.vmem [shape: f32[32,8], index: 16, kind: output, shape index: {1}]
  %17 = xla_tuple %s15, %s16
  %s18 = sld [smem:[#allocation0]]
  $region90: #{tpu_custom_call.1} parent=0
    _
  %s20 = ssub.s32 1, %s18
  %s21 = scalar_select 0, %s20, %s18
  $region1: #{tpu_custom_call.1} parent=0
    #allocation2 [shape = 'u8[512]{0}', space=vmem, size = 0x400, scoped, tag = 'input window, operand 7, single buffered']
    #allocation3 [shape = 's32[1]{0}', space=sflag, size = 0x4, scoped, tag = 'scoped memory for tpu_custom_call.1']
    #allocation4 [shape = 's32[1]{0}', space=sflag, size = 0x4, scoped, tag = 'scoped memory for tpu_custom_call.1']
    #allocation5 [shape = 'u8[512]{0}', space=vmem, size = 0x400, scoped, tag = 'input window, operand 9, single buffered']
    #allocation6 [shape = 's32[1]{0}', space=sflag, size = 0x4, scoped, tag = 'scoped memory for tpu_custom_call.1']
    #allocation7 [shape = 'u8[4096]{0}', space=vmem, size = 0x1000, scoped, tag = 'input window, operand 14, single buffered']
    #allocation8 [shape = 'u8[16384]{0}', space=vmem, size = 0x4000, scoped, tag = 'output window, operand 0, single buffered']
    %22 = vsyncpa [#allocation3], 0
    %23 = vsyncpa [#allocation6], 0
    %24 = vsyncpa [#allocation4], 0
    // Predicated region
    $region2: #{tpu_custom_call.1} parent=1 // pred_check
      _
    $region3: #{tpu_custom_call.1} parent=1 // pred_check_branch
      %26 = sbr.rel (0) target = $region5
    $region4: #{tpu_custom_call.1} parent=1 // pred_region
      _
    $region5: #{tpu_custom_call.1} parent=1 // pred_fallthru
      _
    // Predicated region
    $region6: #{tpu_custom_call.1} parent=1 // pred_check
      _
    $region7: #{tpu_custom_call.1} parent=1 // pred_check_branch
      %28 = sbr.rel (0) target = $region9
    $region8: #{tpu_custom_call.1} parent=1 // pred_region
      _
    $region9: #{tpu_custom_call.1} parent=1 // pred_fallthru
      _
    // Predicated region
    $region10: #{tpu_custom_call.1} parent=1 // pred_check
      _
    $region11: #{tpu_custom_call.1} parent=1 // pred_check_branch
      %30 = sbr.rel (0) target = $region13
    $region12: #{tpu_custom_call.1} parent=1 // pred_region
      _
    $region13: #{tpu_custom_call.1} parent=1 // pred_fallthru
      _
    // Predicated region
    $region14: #{tpu_custom_call.1} parent=1 // pred_check
      _
    $region15: #{tpu_custom_call.1} parent=1 // pred_check_branch
      %32 = sbr.rel (0) target = $region17
    $region16: #{tpu_custom_call.1} parent=1 // pred_region
      _
    $region17: #{tpu_custom_call.1} parent=1 // pred_fallthru
      _
    // Predicated region
    $region18: #{tpu_custom_call.1} parent=1 // pred_check
      _
    $region19: #{tpu_custom_call.1} parent=1 // pred_check_branch
      %34 = sbr.rel (0) target = $region21
    $region20: #{tpu_custom_call.1} parent=1 // pred_region
      _
    $region21: #{tpu_custom_call.1} parent=1 // pred_fallthru
      _
    // Predicated region
    $region22: #{tpu_custom_call.1} parent=1 // pred_check
      _
    $region23: #{tpu_custom_call.1} parent=1 // pred_check_branch
      %36 = sbr.rel (0) target = $region25
    $region24: #{tpu_custom_call.1} parent=1 // pred_region
      _
    $region25: #{tpu_custom_call.1} parent=1 // pred_fallthru
      _
    // Predicated region
    $region26: #{tpu_custom_call.1} parent=1 // pred_check
      _
    $region27: #{tpu_custom_call.1} parent=1 // pred_check_branch
      %38 = sbr.rel (0) target = $region29
    $region28: #{tpu_custom_call.1} parent=1 // pred_region
      _
    $region29: #{tpu_custom_call.1} parent=1 // pred_fallthru
      _
    // Predicated region
    $region30: #{tpu_custom_call.1} parent=1 // pred_check
      _
    $region31: #{tpu_custom_call.1} parent=1 // pred_check_branch
      %40 = sbr.rel (0) target = $region33
    $region32: #{tpu_custom_call.1} parent=1 // pred_region
      %s42 = ssub.s32 16, 16
      %43 = vsyncadd [#allocation3], %s42
      %s45 = sshll.u32 [#allocation2], 4
      %s46 = int_to_ptr.vmem [resolvable:$true] %s45
      %48 = dma.hbm_to_vmem [thread:$0]  %s7, 16, %s46, [#allocation3]
    $region33: #{tpu_custom_call.1} parent=1 // pred_fallthru
      _
    // Predicated region
    $region34: #{tpu_custom_call.1} parent=1 // pred_check
      _
    $region35: #{tpu_custom_call.1} parent=1 // pred_check_branch
      %50 = sbr.rel (0) target = $region37
    $region36: #{tpu_custom_call.1} parent=1 // pred_region
      _
    $region37: #{tpu_custom_call.1} parent=1 // pred_fallthru
      _
    // Predicated region
    $region38: #{tpu_custom_call.1} parent=1 // pred_check
      _
    $region39: #{tpu_custom_call.1} parent=1 // pred_check_branch
      %52 = sbr.rel (0) target = $region41
    $region40: #{tpu_custom_call.1} parent=1 // pred_region
      %s54 = ssub.s32 16, 16
      %55 = vsyncadd [#allocation6], %s54
      %s57 = sshll.u32 [#allocation5], 4
      %s58 = int_to_ptr.vmem [resolvable:$true] %s57
      %60 = dma.hbm_to_vmem [thread:$0]  %s9, 16, %s58, [#allocation6]
    $region41: #{tpu_custom_call.1} parent=1 // pred_fallthru
      _
    // Predicated region
    $region42: #{tpu_custom_call.1} parent=1 // pred_check
      _
    $region43: #{tpu_custom_call.1} parent=1 // pred_check_branch
      %62 = sbr.rel (0) target = $region45
    $region44: #{tpu_custom_call.1} parent=1 // pred_region
      _
    $region45: #{tpu_custom_call.1} parent=1 // pred_fallthru
      _
    // Predicated region
    $region46: #{tpu_custom_call.1} parent=1 // pred_check
      _
    $region47: #{tpu_custom_call.1} parent=1 // pred_check_branch
      %64 = sbr.rel (0) target = $region49
    $region48: #{tpu_custom_call.1} parent=1 // pred_region
      _
    $region49: #{tpu_custom_call.1} parent=1 // pred_fallthru
      _
    // Predicated region
    $region50: #{tpu_custom_call.1} parent=1 // pred_check
      _
    $region51: #{tpu_custom_call.1} parent=1 // pred_check_branch
      %66 = sbr.rel (0) target = $region53
    $region52: #{tpu_custom_call.1} parent=1 // pred_region
      _
    $region53: #{tpu_custom_call.1} parent=1 // pred_fallthru
      _
    // Predicated region
    $region54: #{tpu_custom_call.1} parent=1 // pred_check
      _
    $region55: #{tpu_custom_call.1} parent=1 // pred_check_branch
      %68 = sbr.rel (0) target = $region57
    $region56: #{tpu_custom_call.1} parent=1 // pred_region
      _
    $region57: #{tpu_custom_call.1} parent=1 // pred_fallthru
      _
    // Predicated region
    $region58: #{tpu_custom_call.1} parent=1 // pred_check
      _
    $region59: #{tpu_custom_call.1} parent=1 // pred_check_branch
      %70 = sbr.rel (0) target = $region61
    $region60: #{tpu_custom_call.1} parent=1 // pred_region
      %s72 = ssub.s32 128, 128
      %73 = vsyncadd [#allocation6], %s72
      %s75 = sshll.u32 [#allocation7], 4
      %s76 = int_to_ptr.vmem [resolvable:$true] %s75
      %78 = dma.hbm_to_vmem [thread:$0]  %s14, 128, %s76, [#allocation6]
    $region61: #{tpu_custom_call.1} parent=1 // pred_fallthru
      _
    // Predicated region
    $region62: #{tpu_custom_call.1} parent=1 // pred_check
      _
    $region63: #{tpu_custom_call.1} parent=1 // pred_check_branch
      %80 = sbr.rel (0) target = $region65
    $region64: #{tpu_custom_call.1} parent=1 // pred_region
      %81 = dma.done [#allocation3], 16
    $region65: #{tpu_custom_call.1} parent=1 // pred_fallthru
      _
    // Predicated region
    $region66: #{tpu_custom_call.1} parent=1 // pred_check
      _
    $region67: #{tpu_custom_call.1} parent=1 // pred_check_branch
      %83 = sbr.rel (0) target = $region69
    $region68: #{tpu_custom_call.1} parent=1 // pred_region
      %84 = dma.done [#allocation6], 16
    $region69: #{tpu_custom_call.1} parent=1 // pred_fallthru
      _
    // Predicated region
    $region70: #{tpu_custom_call.1} parent=1 // pred_check
      _
    $region71: #{tpu_custom_call.1} parent=1 // pred_check_branch
      %86 = sbr.rel (0) target = $region73
    $region72: #{tpu_custom_call.1} parent=1 // pred_region
      %87 = dma.done [#allocation6], 128
    $region73: #{tpu_custom_call.1} parent=1 // pred_fallthru
      _
    %v89 = vld [vmem:[%s1] sm:$0xf]
    %v90 = vld [vmem:[%s1 + $0x4] sm:$0xf]
    %v91 = vld [vmem:[%s2] sm:$0xf]
    %v92 = vld [vmem:[%s2 + $0x4] sm:$0xf]
    %v93 = vld [vmem:[%s2 + $0x8] sm:$0xf]
    %v94 = vld [vmem:[%s2 + $0xc] sm:$0xf]
    %v95 = vld [vmem:[%s2 + $0x10] sm:$0xf]
    %v96 = vld [vmem:[%s2 + $0x14] sm:$0xf]
    %v97 = vld [vmem:[%s2 + $0x18] sm:$0xf]
    %v98 = vld [vmem:[%s2 + $0x1c] sm:$0xf]
    %v99 = vld [vmem:[%s2 + $0x20] sm:$0xf]
    %v100 = vld [vmem:[%s2 + $0x24] sm:$0xf]
    %v101 = vld [vmem:[%s2 + $0x28] sm:$0xf]
    %v102 = vld [vmem:[%s2 + $0x2c] sm:$0xf]
    %v103 = vld [vmem:[%s2 + $0x30] sm:$0xf]
    %v104 = vld [vmem:[%s2 + $0x34] sm:$0xf]
    %v105 = vld [vmem:[%s2 + $0x38] sm:$0xf]
    %v106 = vld [vmem:[%s2 + $0x3c] sm:$0xf]
    %v107 = vld [vmem:[%s3] sm:$0x1]
    %v108 = vld [vmem:[%s4] sm:$0xf]
    %v109 = vld [vmem:[%s4 + $0x4] sm:$0xf]
    %v110 = vld [vmem:[%s4 + $0x8] sm:$0xf]
    %v111 = vld [vmem:[%s4 + $0xc] sm:$0xf]
    %v112 = vld [vmem:[%s4 + $0x10] sm:$0xf]
    %v113 = vld [vmem:[%s4 + $0x14] sm:$0xf]
    %v114 = vld [vmem:[%s4 + $0x18] sm:$0xf]
    %v115 = vld [vmem:[%s4 + $0x1c] sm:$0xf]
    %v116 = vld [vmem:[%s4 + $0x20] sm:$0xf]
    %v117 = vld [vmem:[%s4 + $0x24] sm:$0xf]
    %v118 = vld [vmem:[%s4 + $0x28] sm:$0xf]
    %v119 = vld [vmem:[%s4 + $0x2c] sm:$0xf]
    %v120 = vld [vmem:[%s4 + $0x30] sm:$0xf]
    %v121 = vld [vmem:[%s4 + $0x34] sm:$0xf]
    %v122 = vld [vmem:[%s4 + $0x38] sm:$0xf]
    %v123 = vld [vmem:[%s4 + $0x3c] sm:$0xf]
    %v124 = vld [vmem:[%s5] sm:$0x1]
    %v125 = vld [vmem:[%s6] sm:$0xf]
    %v126 = vld [vmem:[%s6 + $0x4] sm:$0xf]
    %v127 = vld [vmem:[%s6 + $0x8] sm:$0xf]
    %v128 = vld [vmem:[%s6 + $0xc] sm:$0xf]
    %v129 = vld [vmem:[%s6 + $0x10] sm:$0xf]
    %v130 = vld [vmem:[%s6 + $0x14] sm:$0xf]
    %v131 = vld [vmem:[%s6 + $0x18] sm:$0xf]
    %v132 = vld [vmem:[%s6 + $0x1c] sm:$0xf]
    %v133 = vld [vmem:[%s6 + $0x20] sm:$0xf]
    %v134 = vld [vmem:[%s6 + $0x24] sm:$0xf]
    %v135 = vld [vmem:[%s6 + $0x28] sm:$0xf]
    %v136 = vld [vmem:[%s6 + $0x2c] sm:$0xf]
    %v137 = vld [vmem:[%s6 + $0x30] sm:$0xf]
    %v138 = vld [vmem:[%s6 + $0x34] sm:$0xf]
    %v139 = vld [vmem:[%s6 + $0x38] sm:$0xf]
    %v140 = vld [vmem:[%s6 + $0x3c] sm:$0xf]
    %v141 = vld [vmem:[#allocation2] sm:$0x1]
    %v142 = vld [vmem:[%s8] sm:$0xf]
    %v143 = vld [vmem:[%s8 + $0x4] sm:$0xf]
    %v144 = vld [vmem:[%s8 + $0x8] sm:$0xf]
    %v145 = vld [vmem:[%s8 + $0xc] sm:$0xf]
    %v146 = vld [vmem:[%s8 + $0x10] sm:$0xf]
    %v147 = vld [vmem:[%s8 + $0x14] sm:$0xf]
    %v148 = vld [vmem:[%s8 + $0x18] sm:$0xf]
    %v149 = vld [vmem:[%s8 + $0x1c] sm:$0xf]
    %v150 = vld [vmem:[%s8 + $0x20] sm:$0xf]
    %v151 = vld [vmem:[%s8 + $0x24] sm:$0xf]
    %v152 = vld [vmem:[%s8 + $0x28] sm:$0xf]
    %v153 = vld [vmem:[%s8 + $0x2c] sm:$0xf]
    %v154 = vld [vmem:[%s8 + $0x30] sm:$0xf]
    %v155 = vld [vmem:[%s8 + $0x34] sm:$0xf]
    %v156 = vld [vmem:[%s8 + $0x38] sm:$0xf]
    %v157 = vld [vmem:[%s8 + $0x3c] sm:$0xf]
    %v158 = vld [vmem:[#allocation5] sm:$0x1]
    %v159 = vld [vmem:[%s10] sm:$0xff]
    %v160 = vld [vmem:[%s10 + $0x8] sm:$0xff]
    %v161 = vld [vmem:[%s10 + $0x10] sm:$0xff]
    %v162 = vld [vmem:[%s10 + $0x18] sm:$0xff]
    %v163 = vld [vmem:[%s10 + $0x20] sm:$0xff]
    %v164 = vld [vmem:[%s10 + $0x28] sm:$0xff]
    %v165 = vld [vmem:[%s10 + $0x30] sm:$0xff]
    %v166 = vld [vmem:[%s10 + $0x38] sm:$0xff]
    %v167 = vld [vmem:[%s10 + $0x40] sm:$0xff]
    %v168 = vld [vmem:[%s10 + $0x48] sm:$0xff]
    %v169 = vld [vmem:[%s10 + $0x50] sm:$0xff]
    %v170 = vld [vmem:[%s10 + $0x58] sm:$0xff]
    %v171 = vld [vmem:[%s10 + $0x60] sm:$0xff]
    %v172 = vld [vmem:[%s10 + $0x68] sm:$0xff]
    %v173 = vld [vmem:[%s10 + $0x70] sm:$0xff]
    %v174 = vld [vmem:[%s10 + $0x78] sm:$0xff]
    %v175 = vld [vmem:[%s11] sm:$0x3]
    %v176 = vld [vmem:[%s12] sm:$0xf]
    %v177 = vld [vmem:[%s12 + $0x4] sm:$0xf]
    %v178 = vld [vmem:[%s12 + $0x8] sm:$0xf]
    %v179 = vld [vmem:[%s12 + $0xc] sm:$0xf]
    %v180 = vld [vmem:[%s12 + $0x10] sm:$0xf]
    %v181 = vld [vmem:[%s12 + $0x14] sm:$0xf]
    %v182 = vld [vmem:[%s12 + $0x18] sm:$0xf]
    %v183 = vld [vmem:[%s12 + $0x1c] sm:$0xf]
    %v184 = vld [vmem:[%s12 + $0x20] sm:$0xf]
    %v185 = vld [vmem:[%s12 + $0x24] sm:$0xf]
    %v186 = vld [vmem:[%s12 + $0x28] sm:$0xf]
    %v187 = vld [vmem:[%s12 + $0x2c] sm:$0xf]
    %v188 = vld [vmem:[%s12 + $0x30] sm:$0xf]
    %v189 = vld [vmem:[%s12 + $0x34] sm:$0xf]
    %v190 = vld [vmem:[%s12 + $0x38] sm:$0xf]
    %v191 = vld [vmem:[%s12 + $0x3c] sm:$0xf]
    %v192 = vld [vmem:[%s12 + $0x40] sm:$0xf]
    %v193 = vld [vmem:[%s12 + $0x44] sm:$0xf]
    %v194 = vld [vmem:[%s12 + $0x48] sm:$0xf]
    %v195 = vld [vmem:[%s12 + $0x4c] sm:$0xf]
    %v196 = vld [vmem:[%s12 + $0x50] sm:$0xf]
    %v197 = vld [vmem:[%s12 + $0x54] sm:$0xf]
    %v198 = vld [vmem:[%s12 + $0x58] sm:$0xf]
    %v199 = vld [vmem:[%s12 + $0x5c] sm:$0xf]
    %v200 = vld [vmem:[%s13] sm:$0x1]
    %v201 = vld [vmem:[#allocation7] sm:$0x1]
    %v202 = vld [vmem:[#allocation7 + $0x1] sm:$0x1]
    %v203 = vld [vmem:[#allocation7 + $0x2] sm:$0x1]
    %v204 = vld [vmem:[#allocation7 + $0x3] sm:$0x1]
    %v205 = vld [vmem:[#allocation7 + $0x4] sm:$0x1]
    %v206 = vld [vmem:[%s0] sm:$0xf]
    %v207 = vld [vmem:[%s0 + $0x4] sm:$0xf]
    %v208 = vld [vmem:[%s0 + $0x8] sm:$0xf]
    %v209 = vld [vmem:[%s0 + $0xc] sm:$0xf]
    %v214 = vunpack.c.l.b16 %v206
    %v215 = vunpack.c.l.b16 %v207
    %v216 = vunpack.c.l.b16 %v208
    %v217 = vunpack.c.l.b16 %v209
    %v218 = vpack.c.b16 %v215, %v214
    %v219 = vpack.c.b16 %v217, %v216
    %v222 = vunpack.c.l.b16 %v89
    %v223 = vunpack.c.l.b16 %v90
    %v224 = vpack.c.b16 %v223, %v222
    %vm226 = vcmask 130048
    %v228 = vsel %vm226, %v218, 0
    %v231 = vsel %vm226, %v219, 0
    %233 = vmatprep.subr.bf16.mxu0 0
    %234 = vmatpush1.bf16.msra.mxu0 0
    %235 = vmatprep.subr.bf16.mxu0 0
    %236 = vmatpush1.bf16.msra.mxu0 0
    %237 = vmatprep.subr.bf16.mxu0 0
    %238 = vmatpush1.bf16.msra.mxu0 0
    %239 = vmatprep.subr.bf16.mxu0 0
    %240 = vmatpush1.bf16.msra.mxu0 0
    %241 = vmatprep.subr.bf16.mxu0 0
    %242 = vmatpush1.bf16.msra.mxu0 0
    %243 = vmatprep.subr.bf16.mxu0 0
    %244 = vmatpush1.bf16.msra.mxu0 0
    %245 = vmatprep.subr.bf16.mxu0 0
    %246 = vmatpush1.bf16.msra.mxu0 0
    %247 = vmatprep.subr.bf16.mxu0 0
    %248 = vmatpush1.bf16.msra.mxu0 %v224
    %249 = vmatprep.subr.bf16.mxu0 0
    %250 = vmatpush2.bf16.msra.mxu0 0
    %251 = vmatprep.subr.bf16.mxu0 0
    %252 = vmatpush2.bf16.msra.mxu0 0
    %253 = vmatprep.subr.bf16.mxu0 0
    %254 = vmatpush2.bf16.msra.mxu0 0
    %255 = vmatprep.subr.bf16.mxu0 0
    %256 = vmatpush2.bf16.msra.mxu0 0
    %257 = vmatprep.subr.bf16.mxu0 0
    %258 = vmatpush2.bf16.msra.mxu0 0
    %259 = vmatprep.subr.bf16.mxu0 0
    %260 = vmatpush2.bf16.msra.mxu0 0
    %261 = vmatprep.subr.bf16.mxu0 0
    %262 = vmatpush2.bf16.msra.mxu0 0
    %263 = vmatprep.subr.bf16.mxu0 0
    %264 = vmatpush2.bf16.msra.mxu0 0
    %265 = vmatprep.mubr.bf16.mxu0 0
    %266 = vmatmul.mubr.bf16.gmra.mxu0 %v228
    %v267 = vpop.f32.mrf.mxu0
    %v268 = vadd.f32 0.0, %v267
    %v269 = vpop.f32.mrf.mxu0
    %v270 = vpop.f32.mrf.mxu0
    %v271 = vadd.f32 0.0, %v270
    %v272 = vpop.f32.mrf.mxu0
    %273 = vmatprep.mubr.bf16.mxu0 0
    %274 = vmatmul.mubr.bf16.gmra.mxu0 %v231
    %v275 = vpop.f32.mrf.mxu0
    %v276 = vadd.f32 0.0, %v275
    %v277 = vpop.f32.mrf.mxu0
    %v278 = vpop.f32.mrf.mxu0
    %v279 = vadd.f32 0.0, %v278
    %v280 = vpop.f32.mrf.mxu0
    %281 = vdwg.mxu0
    %v282 = vtanh.pop %v268
    %v283 = vtanh.pop %v271
    %v284 = vtanh.pop %v276
    %v285 = vtanh.pop %v279
    %v286 = vpack.c.bf16 %v283, %v282
    %v287 = vpack.c.bf16 %v285, %v284
    %v289 = vlaneseq
    %v290 = vshrl.u32 %v289, 7
    %v291 = vsub.s32 0, %v290
    %v292 = vrot.slane %v107, %v291
    %v310 = vunpack.c.l.b16 %v91
    %v311 = vunpack.c.l.b16 %v92
    %v312 = vunpack.c.l.b16 %v93
    %v313 = vunpack.c.l.b16 %v94
    %v314 = vunpack.c.l.b16 %v95
    %v315 = vunpack.c.l.b16 %v96
    %v316 = vunpack.c.l.b16 %v97
    %v317 = vunpack.c.l.b16 %v98
    %v318 = vunpack.c.l.b16 %v99
    %v319 = vunpack.c.l.b16 %v100
    %v320 = vunpack.c.l.b16 %v101
    %v321 = vunpack.c.l.b16 %v102
    %v322 = vunpack.c.l.b16 %v103
    %v323 = vunpack.c.l.b16 %v104
    %v324 = vunpack.c.l.b16 %v105
    %v325 = vunpack.c.l.b16 %v106
    %v326 = vpack.c.b16 %v311, %v310
    %v327 = vpack.c.b16 %v313, %v312
    %v328 = vpack.c.b16 %v315, %v314
    %v329 = vpack.c.b16 %v317, %v316
    %v330 = vpack.c.b16 %v319, %v318
    %v331 = vpack.c.b16 %v321, %v320
    %v332 = vpack.c.b16 %v323, %v322
    %v333 = vpack.c.b16 %v325, %v324
    %342 = vmatprep.subr.bf16.mxu0 0
    %343 = vmatpush1.bf16.msra.mxu0 %v333
    %344 = vmatprep.subr.bf16.mxu0 0
    %345 = vmatpush1.bf16.msra.mxu0 %v332
    %346 = vmatprep.subr.bf16.mxu0 0
    %347 = vmatpush1.bf16.msra.mxu0 %v331
    %348 = vmatprep.subr.bf16.mxu0 0
    %349 = vmatpush1.bf16.msra.mxu0 %v330
    %350 = vmatprep.subr.bf16.mxu0 0
    %351 = vmatpush1.bf16.msra.mxu0 %v329
    %352 = vmatprep.subr.bf16.mxu0 0
    %353 = vmatpush1.bf16.msra.mxu0 %v328
    %354 = vmatprep.subr.bf16.mxu0 0
    %355 = vmatpush1.bf16.msra.mxu0 %v327
    %356 = vmatprep.subr.bf16.mxu0 0
    %357 = vmatpush1.bf16.msra.mxu0 %v326
    %358 = vmatprep.subr.bf16.mxu0 0
    %359 = vmatpush2.bf16.msra.mxu0 0
    %360 = vmatprep.subr.bf16.mxu0 0
    %361 = vmatpush2.bf16.msra.mxu0 0
    %362 = vmatprep.subr.bf16.mxu0 0
    %363 = vmatpush2.bf16.msra.mxu0 0
    %364 = vmatprep.subr.bf16.mxu0 0
    %365 = vmatpush2.bf16.msra.mxu0 0
    %366 = vmatprep.subr.bf16.mxu0 0
    %367 = vmatpush2.bf16.msra.mxu0 0
    %368 = vmatprep.subr.bf16.mxu0 0
    %369 = vmatpush2.bf16.msra.mxu0 0
    %370 = vmatprep.subr.bf16.mxu0 0
    %371 = vmatpush2.bf16.msra.mxu0 0
    %372 = vmatprep.subr.bf16.mxu0 0
    %373 = vmatpush2.bf16.msra.mxu0 0
    %374 = vmatprep.mubr.bf16.mxu0 0
    %375 = vmatmul.mubr.bf16.gmra.mxu0 %v286
    %v376 = vpop.f32.mrf.mxu0
    %v377 = vadd.f32 %v292, %v376
    %v378 = vpop.f32.mrf.mxu0
    %v379 = vpop.f32.mrf.mxu0
    %v380 = vadd.f32 %v292, %v379
    %v381 = vpop.f32.mrf.mxu0
    %382 = vmatprep.mubr.bf16.mxu0 0
    %383 = vmatmul.mubr.bf16.gmra.mxu0 %v287
    %v384 = vpop.f32.mrf.mxu0
    %v385 = vadd.f32 %v292, %v384
    %v386 = vpop.f32.mrf.mxu0
    %v387 = vpop.f32.mrf.mxu0
    %v388 = vadd.f32 %v292, %v387
    %v389 = vpop.f32.mrf.mxu0
    %390 = vdwg.mxu0
    %v391 = vtanh.pop %v377
    %v392 = vtanh.pop %v380
    %v393 = vtanh.pop %v385
    %v394 = vtanh.pop %v388
    %v395 = vpack.c.bf16 %v392, %v391
    %v396 = vpack.c.bf16 %v394, %v393
    %v398 = vlaneseq
    %v399 = vshrl.u32 %v398, 7
    %v400 = vsub.s32 0, %v399
    %v401 = vrot.slane %v124, %v400
    %v419 = vunpack.c.l.b16 %v108
    %v420 = vunpack.c.l.b16 %v109
    %v421 = vunpack.c.l.b16 %v110
    %v422 = vunpack.c.l.b16 %v111
    %v423 = vunpack.c.l.b16 %v112
    %v424 = vunpack.c.l.b16 %v113
    %v425 = vunpack.c.l.b16 %v114
    %v426 = vunpack.c.l.b16 %v115
    %v427 = vunpack.c.l.b16 %v116
    %v428 = vunpack.c.l.b16 %v117
    %v429 = vunpack.c.l.b16 %v118
    %v430 = vunpack.c.l.b16 %v119
    %v431 = vunpack.c.l.b16 %v120
    %v432 = vunpack.c.l.b16 %v121
    %v433 = vunpack.c.l.b16 %v122
    %v434 = vunpack.c.l.b16 %v123
    %v435 = vpack.c.b16 %v420, %v419
    %v436 = vpack.c.b16 %v422, %v421
    %v437 = vpack.c.b16 %v424, %v423
    %v438 = vpack.c.b16 %v426, %v425
    %v439 = vpack.c.b16 %v428, %v427
    %v440 = vpack.c.b16 %v430, %v429
    %v441 = vpack.c.b16 %v432, %v431
    %v442 = vpack.c.b16 %v434, %v433
    %451 = vmatprep.subr.bf16.mxu0 0
    %452 = vmatpush1.bf16.msra.mxu0 %v442
    %453 = vmatprep.subr.bf16.mxu0 0
    %454 = vmatpush1.bf16.msra.mxu0 %v441
    %455 = vmatprep.subr.bf16.mxu0 0
    %456 = vmatpush1.bf16.msra.mxu0 %v440
    %457 = vmatprep.subr.bf16.mxu0 0
    %458 = vmatpush1.bf16.msra.mxu0 %v439
    %459 = vmatprep.subr.bf16.mxu0 0
    %460 = vmatpush1.bf16.msra.mxu0 %v438
    %461 = vmatprep.subr.bf16.mxu0 0
    %462 = vmatpush1.bf16.msra.mxu0 %v437
    %463 = vmatprep.subr.bf16.mxu0 0
    %464 = vmatpush1.bf16.msra.mxu0 %v436
    %465 = vmatprep.subr.bf16.mxu0 0
    %466 = vmatpush1.bf16.msra.mxu0 %v435
    %467 = vmatprep.subr.bf16.mxu0 0
    %468 = vmatpush2.bf16.msra.mxu0 0
    %469 = vmatprep.subr.bf16.mxu0 0
    %470 = vmatpush2.bf16.msra.mxu0 0
    %471 = vmatprep.subr.bf16.mxu0 0
    %472 = vmatpush2.bf16.msra.mxu0 0
    %473 = vmatprep.subr.bf16.mxu0 0
    %474 = vmatpush2.bf16.msra.mxu0 0
    %475 = vmatprep.subr.bf16.mxu0 0
    %476 = vmatpush2.bf16.msra.mxu0 0
    %477 = vmatprep.subr.bf16.mxu0 0
    %478 = vmatpush2.bf16.msra.mxu0 0
    %479 = vmatprep.subr.bf16.mxu0 0
    %480 = vmatpush2.bf16.msra.mxu0 0
    %481 = vmatprep.subr.bf16.mxu0 0
    %482 = vmatpush2.bf16.msra.mxu0 0
    %483 = vmatprep.mubr.bf16.mxu0 0
    %484 = vmatmul.mubr.bf16.gmra.mxu0 %v395
    %v485 = vpop.f32.mrf.mxu0
    %v486 = vadd.f32 %v401, %v485
    %v487 = vpop.f32.mrf.mxu0
    %v488 = vpop.f32.mrf.mxu0
    %v489 = vadd.f32 %v401, %v488
    %v490 = vpop.f32.mrf.mxu0
    %491 = vmatprep.mubr.bf16.mxu0 0
    %492 = vmatmul.mubr.bf16.gmra.mxu0 %v396
    %v493 = vpop.f32.mrf.mxu0
    %v494 = vadd.f32 %v401, %v493
    %v495 = vpop.f32.mrf.mxu0
    %v496 = vpop.f32.mrf.mxu0
    %v497 = vadd.f32 %v401, %v496
    %v498 = vpop.f32.mrf.mxu0
    %499 = vdwg.mxu0
    %v500 = vtanh.pop %v486
    %v501 = vtanh.pop %v489
    %v502 = vtanh.pop %v494
    %v503 = vtanh.pop %v497
    %v504 = vpack.c.bf16 %v501, %v500
    %v505 = vpack.c.bf16 %v503, %v502
    %v507 = vlaneseq
    %v508 = vshrl.u32 %v507, 7
    %v509 = vsub.s32 0, %v508
    %v510 = vrot.slane %v141, %v509
    %v528 = vunpack.c.l.b16 %v125
    %v529 = vunpack.c.l.b16 %v126
    %v530 = vunpack.c.l.b16 %v127
    %v531 = vunpack.c.l.b16 %v128
    %v532 = vunpack.c.l.b16 %v129
    %v533 = vunpack.c.l.b16 %v130
    %v534 = vunpack.c.l.b16 %v131
    %v535 = vunpack.c.l.b16 %v132
    %v536 = vunpack.c.l.b16 %v133
    %v537 = vunpack.c.l.b16 %v134
    %v538 = vunpack.c.l.b16 %v135
    %v539 = vunpack.c.l.b16 %v136
    %v540 = vunpack.c.l.b16 %v137
    %v541 = vunpack.c.l.b16 %v138
    %v542 = vunpack.c.l.b16 %v139
    %v543 = vunpack.c.l.b16 %v140
    %v544 = vpack.c.b16 %v529, %v528
    %v545 = vpack.c.b16 %v531, %v530
    %v546 = vpack.c.b16 %v533, %v532
    %v547 = vpack.c.b16 %v535, %v534
    %v548 = vpack.c.b16 %v537, %v536
    %v549 = vpack.c.b16 %v539, %v538
    %v550 = vpack.c.b16 %v541, %v540
    %v551 = vpack.c.b16 %v543, %v542
    %560 = vmatprep.subr.bf16.mxu0 0
    %561 = vmatpush1.bf16.msra.mxu0 %v551
    %562 = vmatprep.subr.bf16.mxu0 0
    %563 = vmatpush1.bf16.msra.mxu0 %v550
    %564 = vmatprep.subr.bf16.mxu0 0
    %565 = vmatpush1.bf16.msra.mxu0 %v549
    %566 = vmatprep.subr.bf16.mxu0 0
    %567 = vmatpush1.bf16.msra.mxu0 %v548
    %568 = vmatprep.subr.bf16.mxu0 0
    %569 = vmatpush1.bf16.msra.mxu0 %v547
    %570 = vmatprep.subr.bf16.mxu0 0
    %571 = vmatpush1.bf16.msra.mxu0 %v546
    %572 = vmatprep.subr.bf16.mxu0 0
    %573 = vmatpush1.bf16.msra.mxu0 %v545
    %574 = vmatprep.subr.bf16.mxu0 0
    %575 = vmatpush1.bf16.msra.mxu0 %v544
    %576 = vmatprep.subr.bf16.mxu0 0
    %577 = vmatpush2.bf16.msra.mxu0 0
    %578 = vmatprep.subr.bf16.mxu0 0
    %579 = vmatpush2.bf16.msra.mxu0 0
    %580 = vmatprep.subr.bf16.mxu0 0
    %581 = vmatpush2.bf16.msra.mxu0 0
    %582 = vmatprep.subr.bf16.mxu0 0
    %583 = vmatpush2.bf16.msra.mxu0 0
    %584 = vmatprep.subr.bf16.mxu0 0
    %585 = vmatpush2.bf16.msra.mxu0 0
    %586 = vmatprep.subr.bf16.mxu0 0
    %587 = vmatpush2.bf16.msra.mxu0 0
    %588 = vmatprep.subr.bf16.mxu0 0
    %589 = vmatpush2.bf16.msra.mxu0 0
    %590 = vmatprep.subr.bf16.mxu0 0
    %591 = vmatpush2.bf16.msra.mxu0 0
    %592 = vmatprep.mubr.bf16.mxu0 0
    %593 = vmatmul.mubr.bf16.gmra.mxu0 %v504
    %v594 = vpop.f32.mrf.mxu0
    %v595 = vadd.f32 %v510, %v594
    %v596 = vpop.f32.mrf.mxu0
    %v597 = vpop.f32.mrf.mxu0
    %v598 = vadd.f32 %v510, %v597
    %v599 = vpop.f32.mrf.mxu0
    %600 = vmatprep.mubr.bf16.mxu0 0
    %601 = vmatmul.mubr.bf16.gmra.mxu0 %v505
    %v602 = vpop.f32.mrf.mxu0
    %v603 = vadd.f32 %v510, %v602
    %v604 = vpop.f32.mrf.mxu0
    %v605 = vpop.f32.mrf.mxu0
    %v606 = vadd.f32 %v510, %v605
    %v607 = vpop.f32.mrf.mxu0
    %608 = vdwg.mxu0
    %v609 = vtanh.pop %v595
    %v610 = vtanh.pop %v598
    %v611 = vtanh.pop %v603
    %v612 = vtanh.pop %v606
    %v613 = vpack.c.bf16 %v610, %v609
    %v614 = vpack.c.bf16 %v612, %v611
    %v616 = vlaneseq
    %v617 = vshrl.u32 %v616, 7
    %v618 = vsub.s32 0, %v617
    %v619 = vrot.slane %v158, %v618
    %v637 = vunpack.c.l.b16 %v142
    %v638 = vunpack.c.l.b16 %v143
    %v639 = vunpack.c.l.b16 %v144
    %v640 = vunpack.c.l.b16 %v145
    %v641 = vunpack.c.l.b16 %v146
    %v642 = vunpack.c.l.b16 %v147
    %v643 = vunpack.c.l.b16 %v148
    %v644 = vunpack.c.l.b16 %v149
    %v645 = vunpack.c.l.b16 %v150
    %v646 = vunpack.c.l.b16 %v151
    %v647 = vunpack.c.l.b16 %v152
    %v648 = vunpack.c.l.b16 %v153
    %v649 = vunpack.c.l.b16 %v154
    %v650 = vunpack.c.l.b16 %v155
    %v651 = vunpack.c.l.b16 %v156
    %v652 = vunpack.c.l.b16 %v157
    %v653 = vpack.c.b16 %v638, %v637
    %v654 = vpack.c.b16 %v640, %v639
    %v655 = vpack.c.b16 %v642, %v641
    %v656 = vpack.c.b16 %v644, %v643
    %v657 = vpack.c.b16 %v646, %v645
    %v658 = vpack.c.b16 %v648, %v647
    %v659 = vpack.c.b16 %v650, %v649
    %v660 = vpack.c.b16 %v652, %v651
    %669 = vmatprep.subr.bf16.mxu0 0
    %670 = vmatpush1.bf16.msra.mxu0 %v660
    %671 = vmatprep.subr.bf16.mxu0 0
    %672 = vmatpush1.bf16.msra.mxu0 %v659
    %673 = vmatprep.subr.bf16.mxu0 0
    %674 = vmatpush1.bf16.msra.mxu0 %v658
    %675 = vmatprep.subr.bf16.mxu0 0
    %676 = vmatpush1.bf16.msra.mxu0 %v657
    %677 = vmatprep.subr.bf16.mxu0 0
    %678 = vmatpush1.bf16.msra.mxu0 %v656
    %679 = vmatprep.subr.bf16.mxu0 0
    %680 = vmatpush1.bf16.msra.mxu0 %v655
    %681 = vmatprep.subr.bf16.mxu0 0
    %682 = vmatpush1.bf16.msra.mxu0 %v654
    %683 = vmatprep.subr.bf16.mxu0 0
    %684 = vmatpush1.bf16.msra.mxu0 %v653
    %685 = vmatprep.subr.bf16.mxu0 0
    %686 = vmatpush2.bf16.msra.mxu0 0
    %687 = vmatprep.subr.bf16.mxu0 0
    %688 = vmatpush2.bf16.msra.mxu0 0
    %689 = vmatprep.subr.bf16.mxu0 0
    %690 = vmatpush2.bf16.msra.mxu0 0
    %691 = vmatprep.subr.bf16.mxu0 0
    %692 = vmatpush2.bf16.msra.mxu0 0
    %693 = vmatprep.subr.bf16.mxu0 0
    %694 = vmatpush2.bf16.msra.mxu0 0
    %695 = vmatprep.subr.bf16.mxu0 0
    %696 = vmatpush2.bf16.msra.mxu0 0
    %697 = vmatprep.subr.bf16.mxu0 0
    %698 = vmatpush2.bf16.msra.mxu0 0
    %699 = vmatprep.subr.bf16.mxu0 0
    %700 = vmatpush2.bf16.msra.mxu0 0
    %701 = vmatprep.mubr.bf16.mxu0 0
    %702 = vmatmul.mubr.bf16.gmra.mxu0 %v613
    %v703 = vpop.f32.mrf.mxu0
    %v704 = vadd.f32 %v619, %v703
    %v705 = vpop.f32.mrf.mxu0
    %v706 = vpop.f32.mrf.mxu0
    %v707 = vadd.f32 %v619, %v706
    %v708 = vpop.f32.mrf.mxu0
    %709 = vmatprep.mubr.bf16.mxu0 0
    %710 = vmatmul.mubr.bf16.gmra.mxu0 %v614
    %v711 = vpop.f32.mrf.mxu0
    %v712 = vadd.f32 %v619, %v711
    %v713 = vpop.f32.mrf.mxu0
    %v714 = vpop.f32.mrf.mxu0
    %v715 = vadd.f32 %v619, %v714
    %v716 = vpop.f32.mrf.mxu0
    %717 = vdwg.mxu0
    %718 = vst [vmem:[#allocation8] sm:$0xff] %v704
    %719 = vst [vmem:[#allocation8 + $0x8] sm:$0xff] %v707
    %720 = vst [vmem:[#allocation8 + $0x10] sm:$0xff] %v712
    %721 = vst [vmem:[#allocation8 + $0x18] sm:$0xff] %v715
    %v722 = vpack.c.bf16 %v707, %v704
    %v723 = vpack.c.bf16 %v715, %v712
    %v725 = vlaneseq
    %v726 = vshrl.u32 %v725, 7
    %v727 = vsub.s32 0, %v726
    %v728 = vrot.slane %v175, %v727
    %v729 = vlaneseq
    %v730 = vshrl.u32 %v729, 7
    %v731 = vsub.s32 1, %v730
    %v732 = vrot.slane %v175, %v731
    %v751 = vunpack.c.l.b16 %v159
    %v752 = vunpack.c.h.b16 %v159
    %v753 = vunpack.c.l.b16 %v160
    %v754 = vunpack.c.h.b16 %v160
    %v755 = vunpack.c.l.b16 %v161
    %v756 = vunpack.c.h.b16 %v161
    %v757 = vunpack.c.l.b16 %v162
    %v758 = vunpack.c.h.b16 %v162
    %v759 = vunpack.c.l.b16 %v163
    %v760 = vunpack.c.h.b16 %v163
    %v761 = vunpack.c.l.b16 %v164
    %v762 = vunpack.c.h.b16 %v164
    %v763 = vunpack.c.l.b16 %v165
    %v764 = vunpack.c.h.b16 %v165
    %v765 = vunpack.c.l.b16 %v166
    %v766 = vunpack.c.h.b16 %v166
    %v767 = vunpack.c.l.b16 %v167
    %v768 = vunpack.c.h.b16 %v167
    %v769 = vunpack.c.l.b16 %v168
    %v770 = vunpack.c.h.b16 %v168
    %v771 = vunpack.c.l.b16 %v169
    %v772 = vunpack.c.h.b16 %v169
    %v773 = vunpack.c.l.b16 %v170
    %v774 = vunpack.c.h.b16 %v170
    %v775 = vunpack.c.l.b16 %v171
    %v776 = vunpack.c.h.b16 %v171
    %v777 = vunpack.c.l.b16 %v172
    %v778 = vunpack.c.h.b16 %v172
    %v779 = vunpack.c.l.b16 %v173
    %v780 = vunpack.c.h.b16 %v173
    %v781 = vunpack.c.l.b16 %v174
    %v782 = vunpack.c.h.b16 %v174
    %v783 = vpack.c.b16 %v753, %v751
    %v784 = vpack.c.b16 %v754, %v752
    %v785 = vpack.c.b16 %v757, %v755
    %v786 = vpack.c.b16 %v758, %v756
    %v787 = vpack.c.b16 %v761, %v759
    %v788 = vpack.c.b16 %v762, %v760
    %v789 = vpack.c.b16 %v765, %v763
    %v790 = vpack.c.b16 %v766, %v764
    %v791 = vpack.c.b16 %v769, %v767
    %v792 = vpack.c.b16 %v770, %v768
    %v793 = vpack.c.b16 %v773, %v771
    %v794 = vpack.c.b16 %v774, %v772
    %v795 = vpack.c.b16 %v777, %v775
    %v796 = vpack.c.b16 %v778, %v776
    %v797 = vpack.c.b16 %v781, %v779
    %v798 = vpack.c.b16 %v782, %v780
    %815 = vmatprep.subr.bf16.mxu0 %v798
    %816 = vmatpush1.bf16.msra.mxu0 %v797
    %817 = vmatprep.subr.bf16.mxu0 %v796
    %818 = vmatpush1.bf16.msra.mxu0 %v795
    %819 = vmatprep.subr.bf16.mxu0 %v794
    %820 = vmatpush1.bf16.msra.mxu0 %v793
    %821 = vmatprep.subr.bf16.mxu0 %v792
    %822 = vmatpush1.bf16.msra.mxu0 %v791
    %823 = vmatprep.subr.bf16.mxu0 %v790
    %824 = vmatpush1.bf16.msra.mxu0 %v789
    %825 = vmatprep.subr.bf16.mxu0 %v788
    %826 = vmatpush1.bf16.msra.mxu0 %v787
    %827 = vmatprep.subr.bf16.mxu0 %v786
    %828 = vmatpush1.bf16.msra.mxu0 %v785
    %829 = vmatprep.subr.bf16.mxu0 %v784
    %830 = vmatpush1.bf16.msra.mxu0 %v783
    %831 = vmatprep.subr.bf16.mxu0 0
    %832 = vmatpush2.bf16.msra.mxu0 0
    %833 = vmatprep.subr.bf16.mxu0 0
    %834 = vmatpush2.bf16.msra.mxu0 0
    %835 = vmatprep.subr.bf16.mxu0 0
    %836 = vmatpush2.bf16.msra.mxu0 0
    %837 = vmatprep.subr.bf16.mxu0 0
    %838 = vmatpush2.bf16.msra.mxu0 0
    %839 = vmatprep.subr.bf16.mxu0 0
    %840 = vmatpush2.bf16.msra.mxu0 0
    %841 = vmatprep.subr.bf16.mxu0 0
    %842 = vmatpush2.bf16.msra.mxu0 0
    %843 = vmatprep.subr.bf16.mxu0 0
    %844 = vmatpush2.bf16.msra.mxu0 0
    %845 = vmatprep.subr.bf16.mxu0 0
    %846 = vmatpush2.bf16.msra.mxu0 0
    %847 = vmatprep.mubr.bf16.mxu0 0
    %848 = vmatmul.mubr.bf16.gmra.mxu0 %v722
    %v849 = vpop.f32.mrf.mxu0
    %v850 = vadd.f32 %v728, %v849
    %v851 = vpop.f32.mrf.mxu0
    %v852 = vadd.f32 %v732, %v851
    %v853 = vpop.f32.mrf.mxu0
    %v854 = vadd.f32 %v728, %v853
    %v855 = vpop.f32.mrf.mxu0
    %v856 = vadd.f32 %v732, %v855
    %857 = vmatprep.mubr.bf16.mxu0 0
    %858 = vmatmul.mubr.bf16.gmra.mxu0 %v723
    %v859 = vpop.f32.mrf.mxu0
    %v860 = vadd.f32 %v728, %v859
    %v861 = vpop.f32.mrf.mxu0
    %v862 = vadd.f32 %v732, %v861
    %v863 = vpop.f32.mrf.mxu0
    %v864 = vadd.f32 %v728, %v863
    %v865 = vpop.f32.mrf.mxu0
    %v866 = vadd.f32 %v732, %v865
    %867 = vdwg.mxu0
    %v868 = vtanh.pop %v850
    %v869 = vtanh.pop %v852
    %v870 = vtanh.pop %v854
    %v871 = vtanh.pop %v856
    %v872 = vtanh.pop %v860
    %v873 = vtanh.pop %v862
    %v874 = vtanh.pop %v864
    %v875 = vtanh.pop %v866
    %v876 = vpack.c.bf16 %v870, %v868
    %v877 = vpack.c.bf16 %v871, %v869
    %v878 = vpack.c.bf16 %v874, %v872
    %v879 = vpack.c.bf16 %v875, %v873
    %v881 = vlaneseq
    %v882 = vshrl.u32 %v881, 7
    %v883 = vsub.s32 0, %v882
    %v884 = vrot.slane %v200, %v883
    %v910 = vunpack.c.l.b16 %v176
    %v911 = vunpack.c.l.b16 %v177
    %v912 = vunpack.c.l.b16 %v178
    %v913 = vunpack.c.l.b16 %v179
    %v914 = vunpack.c.l.b16 %v180
    %v915 = vunpack.c.l.b16 %v181
    %v916 = vunpack.c.l.b16 %v182
    %v917 = vunpack.c.l.b16 %v183
    %v918 = vunpack.c.l.b16 %v184
    %v919 = vunpack.c.l.b16 %v185
    %v920 = vunpack.c.l.b16 %v186
    %v921 = vunpack.c.l.b16 %v187
    %v922 = vunpack.c.l.b16 %v188
    %v923 = vunpack.c.l.b16 %v189
    %v924 = vunpack.c.l.b16 %v190
    %v925 = vunpack.c.l.b16 %v191
    %v926 = vunpack.c.l.b16 %v192
    %v927 = vunpack.c.l.b16 %v193
    %v928 = vunpack.c.l.b16 %v194
    %v929 = vunpack.c.l.b16 %v195
    %v930 = vunpack.c.l.b16 %v196
    %v931 = vunpack.c.l.b16 %v197
    %v932 = vunpack.c.l.b16 %v198
    %v933 = vunpack.c.l.b16 %v199
    %v934 = vpack.c.b16 %v911, %v910
    %v935 = vpack.c.b16 %v913, %v912
    %v936 = vpack.c.b16 %v915, %v914
    %v937 = vpack.c.b16 %v917, %v916
    %v938 = vpack.c.b16 %v919, %v918
    %v939 = vpack.c.b16 %v921, %v920
    %v940 = vpack.c.b16 %v923, %v922
    %v941 = vpack.c.b16 %v925, %v924
    %v942 = vpack.c.b16 %v927, %v926
    %v943 = vpack.c.b16 %v929, %v928
    %v944 = vpack.c.b16 %v931, %v930
    %v945 = vpack.c.b16 %v933, %v932
    %vm958 = vcmask 523264
    %v960 = vsel %vm958, %v877, 0
    %v963 = vsel %vm958, %v879, 0
    %965 = vmatprep.subr.bf16.mxu0 0
    %966 = vmatpush1.bf16.msra.mxu0 %v941
    %967 = vmatprep.subr.bf16.mxu0 0
    %968 = vmatpush1.bf16.msra.mxu0 %v940
    %969 = vmatprep.subr.bf16.mxu0 0
    %970 = vmatpush1.bf16.msra.mxu0 %v939
    %971 = vmatprep.subr.bf16.mxu0 0
    %972 = vmatpush1.bf16.msra.mxu0 %v938
    %973 = vmatprep.subr.bf16.mxu0 0
    %974 = vmatpush1.bf16.msra.mxu0 %v937
    %975 = vmatprep.subr.bf16.mxu0 0
    %976 = vmatpush1.bf16.msra.mxu0 %v936
    %977 = vmatprep.subr.bf16.mxu0 0
    %978 = vmatpush1.bf16.msra.mxu0 %v935
    %979 = vmatprep.subr.bf16.mxu0 0
    %980 = vmatpush1.bf16.msra.mxu0 %v934
    %981 = vmatprep.subr.bf16.mxu0 0
    %982 = vmatpush2.bf16.msra.mxu0 0
    %983 = vmatprep.subr.bf16.mxu0 0
    %984 = vmatpush2.bf16.msra.mxu0 0
    %985 = vmatprep.subr.bf16.mxu0 0
    %986 = vmatpush2.bf16.msra.mxu0 0
    %987 = vmatprep.subr.bf16.mxu0 0
    %988 = vmatpush2.bf16.msra.mxu0 0
    %989 = vmatprep.subr.bf16.mxu0 0
    %990 = vmatpush2.bf16.msra.mxu0 %v945
    %991 = vmatprep.subr.bf16.mxu0 0
    %992 = vmatpush2.bf16.msra.mxu0 %v944
    %993 = vmatprep.subr.bf16.mxu0 0
    %994 = vmatpush2.bf16.msra.mxu0 %v943
    %995 = vmatprep.subr.bf16.mxu0 0
    %996 = vmatpush2.bf16.msra.mxu0 %v942
    %997 = vmatprep.mubr.bf16.mxu0 %v960
    %998 = vmatmul.mubr.bf16.gmra.mxu0 %v876
    %v999 = vpop.f32.mrf.mxu0
    %v1000 = vadd.f32 %v884, %v999
    %v1001 = vpop.f32.mrf.mxu0
    %v1002 = vpop.f32.mrf.mxu0
    %v1003 = vadd.f32 %v884, %v1002
    %v1004 = vpop.f32.mrf.mxu0
    %1005 = vmatprep.mubr.bf16.mxu0 %v963
    %1006 = vmatmul.mubr.bf16.gmra.mxu0 %v878
    %v1007 = vpop.f32.mrf.mxu0
    %v1008 = vadd.f32 %v884, %v1007
    %v1009 = vpop.f32.mrf.mxu0
    %v1010 = vpop.f32.mrf.mxu0
    %v1011 = vadd.f32 %v884, %v1010
    %v1012 = vpop.f32.mrf.mxu0
    %1013 = vdwg.mxu0
    %v1014 = vlaneseq
    %v1015 = vshrl.u32 %v1014, 7
    %v1016 = vsub.s32 0, %v1015
    %v1017 = vrot.slane %v201, %v1016
    %v1018 = vmax.f32 %v1017, %v1000
    %v1019 = vmax.f32 %v1017, %v1003
    %v1020 = vmax.f32 %v1017, %v1008
    %v1021 = vmax.f32 %v1017, %v1011
    %v1022 = vlaneseq
    %v1023 = vshrl.u32 %v1022, 7
    %v1024 = vsub.s32 0, %v1023
    %v1025 = vrot.slane %v202, %v1024
    %v1026 = vmin.f32 %v1025, %v1018
    %v1027 = vmin.f32 %v1025, %v1019
    %v1028 = vmin.f32 %v1025, %v1020
    %v1029 = vmin.f32 %v1025, %v1021
    %v1030 = vmul.f32 %v1026, 0.0027777778
    %v1031 = vmul.f32 %v1027, 0.0027777778
    %v1032 = vmul.f32 %v1028, 0.0027777778
    %v1033 = vmul.f32 %v1029, 0.0027777778
    %vm1034 = vcmp.lt.f32.partialorder %v1030, 0.0
    %vm1035 = vcmp.lt.f32.partialorder %v1031, 0.0
    %vm1036 = vcmp.lt.f32.partialorder %v1032, 0.0
    %vm1037 = vcmp.lt.f32.partialorder %v1033, 0.0
    %v1038 = vceil.f32 %v1030
    %v1039 = vceil.f32 %v1031
    %v1040 = vceil.f32 %v1032
    %v1041 = vceil.f32 %v1033
    %v1042 = vfloor.f32 %v1030
    %v1043 = vfloor.f32 %v1031
    %v1044 = vfloor.f32 %v1032
    %v1045 = vfloor.f32 %v1033
    %v1046 = vsel %vm1034, %v1038, %v1042
    %v1047 = vsel %vm1035, %v1039, %v1043
    %v1048 = vsel %vm1036, %v1040, %v1044
    %v1049 = vsel %vm1037, %v1041, %v1045
    %v1050 = vmul.f32 %v1046, 360.0
    %v1051 = vmul.f32 %v1047, 360.0
    %v1052 = vmul.f32 %v1048, 360.0
    %v1053 = vmul.f32 %v1049, 360.0
    %v1054 = vsub.f32 %v1026, %v1050
    %v1055 = vsub.f32 %v1027, %v1051
    %v1056 = vsub.f32 %v1028, %v1052
    %v1057 = vsub.f32 %v1029, %v1053
    %vm1058 = vcmp.lt.f32.partialorder %v1054, 0.0
    %vm1059 = vcmp.lt.f32.partialorder %v1055, 0.0
    %vm1060 = vcmp.lt.f32.partialorder %v1056, 0.0
    %vm1061 = vcmp.lt.f32.partialorder %v1057, 0.0
    %v1062 = vadd.f32 %v1054, 360.0
    %v1063 = vadd.f32 %v1055, 360.0
    %v1064 = vadd.f32 %v1056, 360.0
    %v1065 = vadd.f32 %v1057, 360.0
    %v1066 = vsel %vm1058, %v1062, %v1054
    %v1067 = vsel %vm1059, %v1063, %v1055
    %v1068 = vsel %vm1060, %v1064, %v1056
    %v1069 = vsel %vm1061, %v1065, %v1057
    %v1070 = vadd.f32 %v1066, 1e-06
    %v1071 = vadd.f32 %v1067, 1e-06
    %v1072 = vadd.f32 %v1068, 1e-06
    %v1073 = vadd.f32 %v1069, 1e-06
    %v1074 = vrcp.pop %v1070
    %v1075 = vmul.f32 1.0, %v1074
    %v1076 = vrcp.pop %v1071
    %v1077 = vmul.f32 1.0, %v1076
    %v1078 = vrcp.pop %v1072
    %v1079 = vmul.f32 1.0, %v1078
    %v1080 = vrcp.pop %v1073
    %v1081 = vmul.f32 1.0, %v1080
    %v1082 = vmul.f32 %v1075, %v1075
    %v1083 = vmul.f32 %v1077, %v1077
    %v1084 = vmul.f32 %v1079, %v1079
    %v1085 = vmul.f32 %v1081, %v1081
    %v1086 = vlaneseq
    %v1087 = vshrl.u32 %v1086, 7
    %v1088 = vsub.s32 0, %v1087
    %v1089 = vrot.slane %v203, %v1088
    %v1090 = vmul.f32 %v1089, %v1082
    %v1091 = vmul.f32 %v1089, %v1083
    %v1092 = vmul.f32 %v1089, %v1084
    %v1093 = vmul.f32 %v1089, %v1085
    %v1094 = vlaneseq
    %v1095 = vshrl.u32 %v1094, 7
    %v1096 = vsub.s32 0, %v1095
    %v1097 = vrot.slane %v204, %v1096
    %v1098 = vmul.f32 %v1097, %v1066
    %v1099 = vmul.f32 %v1097, %v1067
    %v1100 = vmul.f32 %v1097, %v1068
    %v1101 = vmul.f32 %v1097, %v1069
    %v1102 = vadd.f32 %v1090, %v1098
    %v1103 = vadd.f32 %v1091, %v1099
    %v1104 = vadd.f32 %v1092, %v1100
    %v1105 = vadd.f32 %v1093, %v1101
    %v1106 = vmul.f32 %v1066, %v1066
    %v1107 = vmul.f32 %v1067, %v1067
    %v1108 = vmul.f32 %v1068, %v1068
    %v1109 = vmul.f32 %v1069, %v1069
    %v1110 = vlaneseq
    %v1111 = vshrl.u32 %v1110, 7
    %v1112 = vsub.s32 0, %v1111
    %v1113 = vrot.slane %v205, %v1112
    %v1114 = vmul.f32 %v1113, %v1106
    %v1115 = vmul.f32 %v1113, %v1107
    %v1116 = vmul.f32 %v1113, %v1108
    %v1117 = vmul.f32 %v1113, %v1109
    %v1118 = vadd.f32 %v1102, %v1114
    %v1119 = vadd.f32 %v1103, %v1115
    %v1120 = vadd.f32 %v1104, %v1116
    %v1121 = vadd.f32 %v1105, %v1117
    %vm1122 = vcmask 64512
    %1123 = vst.msk [vmem:[%s16] sm:$0xff] %vm1122, %v1118
    %1124 = vst.msk [vmem:[%s16 + $0x8] sm:$0xff] %vm1122, %v1119
    %1125 = vst.msk [vmem:[%s16 + $0x10] sm:$0xff] %vm1122, %v1120
    %1126 = vst.msk [vmem:[%s16 + $0x18] sm:$0xff] %vm1122, %v1121
    // Predicated region
    $region74: #{tpu_custom_call.1} parent=1 // pred_check
      _
    $region75: #{tpu_custom_call.1} parent=1 // pred_check_branch
      %1128 = sbr.rel (0) target = $region77
    $region76: #{tpu_custom_call.1} parent=1 // pred_region
      %s1130 = ssub.s32 512, 512
      %1131 = vsyncadd [#allocation4], %s1130
      %s1132 = sshll.u32 [#allocation8], 4
      %s1133 = int_to_ptr.vmem [resolvable:$true] %s1132
      %1138 = dma.vmem_to_hbm [thread:$0]  %s1133, 512, %s15, [#allocation4], 128, 128, 8
    $region77: #{tpu_custom_call.1} parent=1 // pred_fallthru
      _
    // Predicated region
    $region78: #{tpu_custom_call.1} parent=1 // pred_check
      _
    $region79: #{tpu_custom_call.1} parent=1 // pred_check_branch
      %1140 = sbr.rel (0) target = $region81
    $region80: #{tpu_custom_call.1} parent=1 // pred_region
      _
    $region81: #{tpu_custom_call.1} parent=1 // pred_fallthru
      _
    // Predicated region
    $region82: #{tpu_custom_call.1} parent=1 // pred_check
      _
    $region83: #{tpu_custom_call.1} parent=1 // pred_check_branch
      %1142 = sbr.rel (0) target = $region85
    $region84: #{tpu_custom_call.1} parent=1 // pred_region
      %1143 = dma.done [#allocation4], 512
    $region85: #{tpu_custom_call.1} parent=1 // pred_fallthru
      _
    // Predicated region
    $region86: #{tpu_custom_call.1} parent=1 // pred_check
      _
    $region87: #{tpu_custom_call.1} parent=1 // pred_check_branch
      %1145 = sbr.rel (0) target = $region89
    $region88: #{tpu_custom_call.1} parent=1 // pred_region
      _
    $region89: #{tpu_custom_call.1} parent=1 // pred_fallthru
      _
    %1146 = vsyncpa [#allocation3], 1
    %1147 = vsyncpa [#allocation6], 1
    %1148 = vsyncpa [#allocation4], 1

</llo_original>
